<compile_context>
chip_gen: v7x
topology: tpu7x:2x2x1
jax: 0.10.0
libtpu: 0.0.40
codegen_flags: <defaults>
</compile_context>

<pallas_src>
import jax
import jax.numpy as jnp
from jax import lax
from jax.experimental import pallas as pl
from jax.experimental.pallas import tpu as pltpu


# ---------------------------------------------------------------------------
# Per-generation VMEM budgets
# ---------------------------------------------------------------------------

def _vmem_limits():
    """(vmem_limit_bytes, planning budget) derived from the chip's VMEM capacity."""
    cap = 64 * 1024 * 1024                       # conservative fallback (v7x-sized)
    try:
        info = pltpu.get_tpu_info()
        cap = int(getattr(info, "vmem_capacity_bytes", cap))
    except Exception:
        pass
    return (3 * cap) // 4, (9 * cap) // 16       # 96/72 MiB @128 MiB chips, 48/36 MiB @v7x


def _divisors(n):
    return [d for d in range(1, n + 1) if n % d == 0]


# ---------------------------------------------------------------------------
# Kernels
# ---------------------------------------------------------------------------

def _upsample_conv_kernel(x_ref, top_ref, bot_ref, w_ref, b_ref, o_ref):
    """One (channel-block, batch, H-tile) step of fused nearest-2x upsample + 3x3 conv.

    x_ref  : (tile_h*W, Kp)    bf16  kx-folded rows of the ORIGINAL image tile
    top_ref: (W, Kp)           bf16  kx-folded original row above the tile (zeros at top edge)
    bot_ref: (W, Kp)           bf16  kx-folded original row below the tile (zeros at bottom edge)
    w_ref  : (3, Kp, blk_n)    bf16  folded weights, one (Kp, blk_n) matrix per dy tap
    b_ref  : (1, blk_n)        f32   bias tiled over the 4 output parities
    o_ref  : (tile_h*W, blk_n) f32   parity-packed output tile (this channel block)
    """
    m = o_ref.shape[0]          # tile_h * W
    w = top_ref.shape[0]        # W  (one original row)
    f32 = jnp.float32
    # dy = 1 (center tap): full tile; the bias initializes the accumulator.
    o_ref[...] = jnp.dot(x_ref[...], w_ref[1], preferred_element_type=f32) + b_ref[...]
    # dy = 0 (row above): top halo feeds output row 0, tile rows [0, m-w) feed rows [w, m).
    o_ref[0:w, :] += jnp.dot(top_ref[...], w_ref[0], preferred_element_type=f32)
    if m > w:   # static (trace-time) — skipped when tile_h == 1
        o_ref[w:m, :] += jnp.dot(x_ref[0:m - w, :], w_ref[0], preferred_element_type=f32)
        # dy = 2 (row below): tile rows [w, m) feed rows [0, m-w); bottom halo feeds last row.
        o_ref[0:m - w, :] += jnp.dot(x_ref[w:m, :], w_ref[2], preferred_element_type=f32)
    o_ref[m - w:m, :] += jnp.dot(bot_ref[...], w_ref[2], preferred_element_type=f32)


def _upsample_only_kernel(x_ref, o_ref):
    """Nearest-2x upsample of one (batch, H-tile) block (pure expand-copy).

    x_ref : (tile_h, W, C)
    o_ref : (tile_h, 2, W, 2*C)   row parity on dim 1, (col parity, C) packed on lanes
    """
    # TODO(synk): for very small C (< 128 lanes) a (W*2*C)-lane packed output layout
    # would make these stores unmasked; kept simple here since LDM C >= 128.
    x = x_ref[...]
    c = x.shape[-1]
    for pi in range(2):                  # row parity
        o_ref[:, pi, :, 0:c] = x         # col parity 0
        o_ref[:, pi, :, c:2 * c] = x     # col parity 1


# ---------------------------------------------------------------------------
# Tiling helpers
# ---------------------------------------------------------------------------

def _pick_blk_n(n4p, Kp, budget):
    """Largest 128-multiple divisor of n4p (<=1024 lanes) whose double-buffered
    weight slab stays within ~1/3 of the VMEM planning budget."""
    blk = 128
    for cand in range(128, min(n4p, 1024) + 1, 128):
        if n4p % cand:
            continue
        if 2 * (3 * Kp * cand * 2) <= budget // 3:
            blk = cand
    return blk


def _pick_tile_h_conv(H, W, Kp, blk_n, B, n_nb, budget):
    """Largest divisor of H whose per-step (double-buffered) footprint fits the budget,
    preferring MXU-aligned M = tile_h*W and at least 2 grid steps."""
    fits = []
    for th in _divisors(H):
        m = th * W
        if (m % 8) and th != H:               # BlockSpec sublane rule
            continue
        vmem = (2 * m * Kp * 2                # main input tile (bf16), double-buffered
                + 2 * 2 * W * Kp * 2          # halo rows (bf16), double-buffered
                + 2 * 3 * Kp * blk_n * 2      # weight block (bf16), double-buffered
                + 2 * blk_n * 4               # bias block
                + 2 * m * blk_n * 4           # output tile (f32), double-buffered
                + m * blk_n * 4)              # matmul temporaries / headroom
        if vmem <= budget:
            fits.append(th)
    if not fits:
        fits = [min(t for t in _divisors(H) if (t * W) % 8 == 0 or t == H)]
    # keep >= 2 grid steps when possible (megacore on v5e/v6e, 2 TensorCores on v7x)
    if B * n_nb < 2:
        smaller = [t for t in fits if t < H]
        if smaller:
            fits = smaller
    aligned = [t for t in fits if (t * W) % 256 == 0]
    return max(aligned) if aligned else max(fits)


def _pick_tile_h_plain(H, W, C, B, budget):
    fits = [th for th in _divisors(H) if 11 * th * W * C * 4 <= budget]
    if not fits:
        fits = [1]
    if B < 2:
        smaller = [t for t in fits if t < H]
        if smaller:
            fits = smaller
    return max(fits)


# ---------------------------------------------------------------------------
# Forward
# ---------------------------------------------------------------------------

def upsample_forward(x_nchw, *, use_conv, conv_w=None, conv_b=None, tile_h=None):
    """Equivalent of Upsample.forward (dims=2). x_nchw: (B, C, H, W) float32 NCHW."""
    B, C, H, W = x_nchw.shape
    vmem_limit, vmem_budget = _vmem_limits()
    x = jnp.transpose(x_nchw, (0, 2, 3, 1))          # NCHW -> NHWC (boundary glue)

    # ------------------------------ use_conv = False ------------------------------
    if not use_conv:
        if tile_h is None:
            tile_h = _pick_tile_h_plain(H, W, C, B, vmem_budget)
        assert H % tile_h == 0, "tile_h must divide H"
        n_th = H // tile_h

        x_t = x.reshape(B * n_th, tile_h, W, C)      # metadata-only reshape
        out = pl.pallas_call(
            _upsample_only_kernel,
            out_shape=jax.ShapeDtypeStruct((B * n_th, tile_h, 2, W, 2 * C), x.dtype),
            grid=(B, n_th),
            in_specs=[pl.BlockSpec((None, tile_h, W, C),
                                   lambda b, h: (b * n_th + h, 0, 0, 0))],
            out_specs=pl.BlockSpec((None, tile_h, 2, W, 2 * C),
                                   lambda b, h: (b * n_th + h, 0, 0, 0, 0)),
            compiler_params=pltpu.CompilerParams(
                dimension_semantics=("parallel", "parallel"),
                vmem_limit_bytes=vmem_limit),
        )(x_t)
        # (B*nTH, tH, 2, W, 2C) -> (B, 2H, 2W, C): pure metadata reshape.
        out = out.reshape(B, 2 * H, 2 * W, C)
        return jnp.transpose(out, (0, 3, 1, 2))

    # ------------------------------ use_conv = True -------------------------------
    assert conv_w is not None and conv_b is not None
    Cout, Cin, kh, kw = conv_w.shape
    assert Cin == C and (kh, kw) == (3, 3), "folding assumes the module default 3x3 conv"
    # TODO(synk): only the module default (3x3, padding=1, stride 1, dims=2) is folded.

    # Output-channel packing: 4 parities * coutp lanes; 4*coutp is a multiple of 128.
    coutp = -(-Cout // 32) * 32
    n4p = 4 * coutp

    # Contraction dim (kx-folded channels): pad to a lane multiple when worthwhile.
    K = 3 * C
    Kp = K if (K % 128 == 0 or K < 128) else (-(-K // 128) * 128)

    # Output-channel grid axis: bounds the per-step weight slab (v7x VMEM, real pipelining).
    blk_n = _pick_blk_n(n4p, Kp, vmem_budget)
    n_nb = n4p // blk_n

    if tile_h is None:
        tile_h = _pick_tile_h_conv(H, W, Kp, blk_n, B, n_nb, vmem_budget)
    assert H % tile_h == 0, "tile_h must divide H"
    assert (tile_h * W) % 8 == 0 or tile_h == H, "tile rows must be 8-aligned"
    n_th = H // tile_h
    M = tile_h * W

    # --- fold nearest-2x upsample + ky/kx taps into the weights (tiny, wrapper-side) ----
    # S[p][dy, ky] = 1 iff kernel tap ky of output parity p reads original-row offset dy-1.
    S = jnp.array([[[1., 0., 0.], [0., 1., 1.], [0., 0., 0.]],
                   [[0., 0., 0.], [1., 1., 0.], [0., 0., 1.]]], dtype=jnp.float32)
    V = jnp.einsum('ayk,bxl,oikl->yxiabo', S, S, conv_w.astype(jnp.float32))
    V = jnp.pad(V, ((0, 0),) * 5 + ((0, coutp - Cout),))      # pad Cout
    w3 = V.reshape(3, K, n4p)
    if Kp != K:
        w3 = jnp.pad(w3, ((0, 0), (0, Kp - K), (0, 0)))
    w3 = w3.astype(jnp.bfloat16)
    b4 = jnp.pad(conv_b.astype(jnp.float32), (0, coutp - Cout))
    b4 = jnp.broadcast_to(b4, (4, coutp)).reshape(1, n4p)

    # --- input layout: bf16, kx folded onto lanes, NO duplicated row windows ------------
    # TODO(synk): a K=C / 9-shifted-matmul variant would cut streamed input bytes ~3x for
    # the HBM-bound regime (v5e, small-C v6e); the kx fold is kept for MXU cleanliness.
    xb = x.astype(jnp.bfloat16)
    xw = jnp.pad(xb, ((0, 0), (0, 0), (1, 1), (0, 0)))                 # W-pad only
    x3 = jnp.concatenate([xw[:, :, dx:dx + W, :] for dx in range(3)], axis=-1)
    if Kp != K:
        x3 = jnp.pad(x3, ((0, 0), (0, 0), (0, 0), (0, Kp - K)))        # (B, H, W, Kp)
    # Halo rows: one original row above / below each tile (zeros at the image edges).
    zrow = jnp.zeros((B, 1, W, Kp), jnp.bfloat16)
    top = jnp.concatenate([zrow, x3[:, tile_h - 1:H - 1:tile_h]], axis=1)   # (B, n_th, W, Kp)
    bot = jnp.concatenate([x3[:, tile_h:H:tile_h], zrow], axis=1)           # (B, n_th, W, Kp)
    x3f = x3.reshape(B, H * W, Kp)                                     # metadata-only

    def _run(single_buf_w):
        wb_kwargs = dict(pipeline_mode=pl.Buffered(1)) if single_buf_w else {}
        return pl.pallas_call(
            _upsample_conv_kernel,
            out_shape=jax.ShapeDtypeStruct((B, n_th, M, n4p), jnp.float32),
            grid=(n_nb, B, n_th),          # N outermost: each weight block DMA'd once
            in_specs=[
                pl.BlockSpec((None, M, Kp), lambda n, b, h: (b, h, 0)),
                pl.BlockSpec((None, None, W, Kp), lambda n, b, h: (b, h, 0, 0)),
                pl.BlockSpec((None, None, W, Kp), lambda n, b, h: (b, h, 0, 0)),
                pl.BlockSpec((3, Kp, blk_n), lambda n, b, h: (0, 0, n), **wb_kwargs),
                pl.BlockSpec((1, blk_n), lambda n, b, h: (0, n), **wb_kwargs),
            ],
            out_specs=pl.BlockSpec((None, None, M, blk_n), lambda n, b, h: (b, h, 0, n)),
            compiler_params=pltpu.CompilerParams(
                dimension_semantics=("parallel", "parallel", "parallel"),
                vmem_limit_bytes=vmem_limit),
        )(x3f, top, bot, w3, b4)

    # Constant-index weight/bias: single-buffer them (frees one weight slab of VMEM);
    # fall back to the default double-buffered pipeline if the path is unsupported.
    if n_nb == 1 and hasattr(pl, "Buffered"):
        try:
            out_pk = _run(True)
        except Exception:
            out_pk = _run(False)
    else:
        out_pk = _run(False)

    # --- unpack parities: folded into the single mandatory NCHW transpose ---------------
    # TODO(synk): emit bf16 / NHWC here when the downstream consumer allows it (halves
    # this last HBM pass).
    t = out_pk.reshape(B, n_th, tile_h, W, 2, 2, coutp)[..., :Cout]
    y = jnp.transpose(t, (0, 6, 1, 2, 4, 3, 5))     # (B, Cout, nTH, tH, pi, W, pj)
    return y.reshape(B, Cout, 2 * H, 2 * W)


# ---------------------------------------------------------------------------
# Pure-JAX reference (matches PyTorch semantics exactly, NCHW)
# ---------------------------------------------------------------------------

def upsample_ref(x_nchw, *, use_conv, conv_w=None, conv_b=None):
    up = jnp.repeat(jnp.repeat(x_nchw, 2, axis=2), 2, axis=3)
    if not use_conv:
        return up
    out = lax.conv_general_dilated(
        up, conv_w, window_strides=(1, 1), padding=((1, 1), (1, 1)),
        dimension_numbers=('NCHW', 'OIHW', 'NCHW'),
        precision=lax.Precision.HIGHEST)
    return out + conv_b[None, :, None, None]


if __name__ == "__main__":
    key = jax.random.PRNGKey(0)
    k_x, k_w, k_b, k_w2, k_b2 = jax.random.split(key, 5)

    B, C, H, W = 2, 4, 16, 16
    Cout = C  # out_channels defaults to channels in the module

    x = jax.random.normal(k_x, (B, C, H, W), dtype=jnp.float32)
    conv_w = jax.random.normal(k_w, (Cout, C, 3, 3), dtype=jnp.float32) * 0.1
    conv_b = jax.random.normal(k_b, (Cout,), dtype=jnp.float32) * 0.1

    # use_conv=True with explicit H tiling (2 tiles of 8 rows) — exercises the halo path.
    y = jax.block_until_ready(
        upsample_forward(x, use_conv=True, conv_w=conv_w, conv_b=conv_b, tile_h=8))
    y_ref = upsample_ref(x, use_conv=True, conv_w=conv_w, conv_b=conv_b)
    assert y.shape == (B, Cout, 2 * H, 2 * W), y.shape
    assert jnp.allclose(y, y_ref, atol=5e-2, rtol=5e-2), float(jnp.max(jnp.abs(y - y_ref)))

    # use_conv=True with auto tile and out_channels != channels (exercises Cout padding).
    Cout2 = 8
    conv_w2 = jax.random.normal(k_w2, (Cout2, C, 3, 3), dtype=jnp.float32) * 0.1
    conv_b2 = jax.random.normal(k_b2, (Cout2,), dtype=jnp.float32) * 0.1
    y2 = jax.block_until_ready(
        upsample_forward(x, use_conv=True, conv_w=conv_w2, conv_b=conv_b2))
    y2_ref = upsample_ref(x, use_conv=True, conv_w=conv_w2, conv_b=conv_b2)
    assert y2.shape == (B, Cout2, 2 * H, 2 * W), y2.shape
    assert jnp.allclose(y2, y2_ref, atol=5e-2, rtol=5e-2), float(jnp.max(jnp.abs(y2 - y2_ref)))

    # use_conv=False (pure nearest upsample, exact).
    y3 = jax.block_until_ready(upsample_forward(x, use_conv=False, tile_h=8))
    y3_ref = upsample_ref(x, use_conv=False)
    assert y3.shape == (B, C, 2 * H, 2 * W), y3.shape
    assert jnp.allclose(y3, y3_ref)

    print("KERNEL_OK")
</pallas_src>

<mosaic_0001>
module attributes {stable_mosaic.version = 11 : i64} {
  func.func @_upsample_conv_kernel(%arg0: i32, %arg1: i32, %arg2: i32, %arg3: memref<1x128x12xbf16, #tpu.memory_space<vmem>>, %arg4: memref<1x1x16x12xbf16, #tpu.memory_space<vmem>>, %arg5: memref<1x1x16x12xbf16, #tpu.memory_space<vmem>>, %arg6: memref<3x12x128xbf16, #tpu.memory_space<vmem>>, %arg7: memref<1x128xf32, #tpu.memory_space<vmem>>, %arg8: memref<1x1x128x128xf32, #tpu.memory_space<vmem>>) attributes {dimension_semantics = [#tpu.dimension_semantics<parallel>, #tpu.dimension_semantics<parallel>, #tpu.dimension_semantics<parallel>], iteration_bounds = array<i64: 1, 2, 2>, scalar_prefetch = 0 : i64, scratch_operands = 0 : i64, tpu.core_type = #tpu.core_type<tc>, window_params = [{transform_indices = @transform_0, window_bounds = array<i64: 1, 128, 12>}, {transform_indices = @transform_1, window_bounds = array<i64: 1, 1, 16, 12>}, {transform_indices = @transform_2, window_bounds = array<i64: 1, 1, 16, 12>}, {pipeline_mode = #tpu.pipeline_mode<synchronous>, transform_indices = @transform_3, window_bounds = array<i64: 3, 12, 128>}, {pipeline_mode = #tpu.pipeline_mode<synchronous>, transform_indices = @transform_4, window_bounds = array<i64: 1, 128>}, {transform_indices = @transform_5, window_bounds = array<i64: 1, 1, 128, 128>}]} {
    %c0 = arith.constant 0 : index
    %c0_0 = arith.constant 0 : index
    %c0_1 = arith.constant 0 : index
    %0 = vector.load %arg3[%c0, %c0_0, %c0_1] : memref<1x128x12xbf16, #tpu.memory_space<vmem>>, vector<1x128x12xbf16>
    %1 = vector.shape_cast %0 : vector<1x128x12xbf16> to vector<128x12xbf16>
    %c1 = arith.constant 1 : index
    %c0_2 = arith.constant 0 : index
    %c0_3 = arith.constant 0 : index
    %2 = vector.load %arg6[%c1, %c0_2, %c0_3] : memref<3x12x128xbf16, #tpu.memory_space<vmem>>, vector<1x12x128xbf16>
    %3 = vector.shape_cast %2 : vector<1x12x128xbf16> to vector<12x128xbf16>
    %cst = arith.constant dense<0.000000e+00> : vector<128x128xf32>
    %4 = tpu.matmul %1, %3, %cst {dimension_numbers = #tpu.dot_dimension_numbers<[1], [0], [0], [1], [0, 0, 1, 1], [], []>} : vector<128x12xbf16>, vector<12x128xbf16>, vector<128x128xf32> -> vector<128x128xf32>
    %c0_4 = arith.constant 0 : index
    %c0_5 = arith.constant 0 : index
    %5 = vector.load %arg7[%c0_4, %c0_5] : memref<1x128xf32, #tpu.memory_space<vmem>>, vector<1x128xf32>
    %6 = vector.broadcast %5 : vector<1x128xf32> to vector<128x128xf32>
    %7 = arith.addf %4, %6 : vector<128x128xf32>
    %c0_6 = arith.constant 0 : index
    %c0_7 = arith.constant 0 : index
    %c0_8 = arith.constant 0 : index
    %c0_9 = arith.constant 0 : index
    %8 = vector.load %arg8[%c0_6, %c0_7, %c0_8, %c0_9] : memref<1x1x128x128xf32, #tpu.memory_space<vmem>>, vector<1x1x128x128xf32>
    %9 = vector.shape_cast %8 : vector<1x1x128x128xf32> to vector<128x128xf32>
    %10 = vector.shape_cast %7 : vector<128x128xf32> to vector<1x1x128x128xf32>
    tpu.vector_store %arg8[%c0_6, %c0_7, %c0_8, %c0_9], %10 {strides = array<i32>} : memref<1x1x128x128xf32, #tpu.memory_space<vmem>>, vector<1x1x128x128xf32>,
    %c0_10 = arith.constant 0 : index
    %c0_11 = arith.constant 0 : index
    %c0_12 = arith.constant 0 : index
    %c0_13 = arith.constant 0 : index
    %11 = vector.load %arg8[%c0_10, %c0_11, %c0_12, %c0_13] : memref<1x1x128x128xf32, #tpu.memory_space<vmem>>, vector<1x1x16x128xf32>
    %12 = vector.shape_cast %11 : vector<1x1x16x128xf32> to vector<16x128xf32>
    %c0_14 = arith.constant 0 : index
    %c0_15 = arith.constant 0 : index
    %c0_16 = arith.constant 0 : index
    %c0_17 = arith.constant 0 : index
    %13 = vector.load %arg4[%c0_14, %c0_15, %c0_16, %c0_17] : memref<1x1x16x12xbf16, #tpu.memory_space<vmem>>, vector<1x1x16x12xbf16>
    %14 = vector.shape_cast %13 : vector<1x1x16x12xbf16> to vector<16x12xbf16>
    %c0_18 = arith.constant 0 : index
    %c0_19 = arith.constant 0 : index
    %c0_20 = arith.constant 0 : index
    %15 = vector.load %arg6[%c0_18, %c0_19, %c0_20] : memref<3x12x128xbf16, #tpu.memory_space<vmem>>, vector<1x12x128xbf16>
    %16 = vector.shape_cast %15 : vector<1x12x128xbf16> to vector<12x128xbf16>
    %cst_21 = arith.constant dense<0.000000e+00> : vector<16x128xf32>
    %17 = tpu.matmul %14, %16, %cst_21 {dimension_numbers = #tpu.dot_dimension_numbers<[1], [0], [0], [1], [0, 0, 1, 1], [], []>} : vector<16x12xbf16>, vector<12x128xbf16>, vector<16x128xf32> -> vector<16x128xf32>
    %18 = arith.addf %12, %17 : vector<16x128xf32>
    %c0_22 = arith.constant 0 : index
    %c0_23 = arith.constant 0 : index
    %c0_24 = arith.constant 0 : index
    %c0_25 = arith.constant 0 : index
    %19 = vector.load %arg8[%c0_22, %c0_23, %c0_24, %c0_25] : memref<1x1x128x128xf32, #tpu.memory_space<vmem>>, vector<1x1x16x128xf32>
    %20 = vector.shape_cast %19 : vector<1x1x16x128xf32> to vector<16x128xf32>
    %21 = vector.shape_cast %18 : vector<16x128xf32> to vector<1x1x16x128xf32>
    tpu.vector_store %arg8[%c0_22, %c0_23, %c0_24, %c0_25], %21 {strides = array<i32>} : memref<1x1x128x128xf32, #tpu.memory_space<vmem>>, vector<1x1x16x128xf32>,
    %c0_26 = arith.constant 0 : index
    %c0_27 = arith.constant 0 : index
    %c16 = arith.constant 16 : index
    %c0_28 = arith.constant 0 : index
    %22 = vector.load %arg8[%c0_26, %c0_27, %c16, %c0_28] : memref<1x1x128x128xf32, #tpu.memory_space<vmem>>, vector<1x1x112x128xf32>
    %23 = vector.shape_cast %22 : vector<1x1x112x128xf32> to vector<112x128xf32>
    %c0_29 = arith.constant 0 : index
    %c0_30 = arith.constant 0 : index
    %c0_31 = arith.constant 0 : index
    %24 = vector.load %arg3[%c0_29, %c0_30, %c0_31] : memref<1x128x12xbf16, #tpu.memory_space<vmem>>, vector<1x112x12xbf16>
    %25 = vector.shape_cast %24 : vector<1x112x12xbf16> to vector<112x12xbf16>
    %c0_32 = arith.constant 0 : index
    %c0_33 = arith.constant 0 : index
    %c0_34 = arith.constant 0 : index
    %26 = vector.load %arg6[%c0_32, %c0_33, %c0_34] : memref<3x12x128xbf16, #tpu.memory_space<vmem>>, vector<1x12x128xbf16>
    %27 = vector.shape_cast %26 : vector<1x12x128xbf16> to vector<12x128xbf16>
    %cst_35 = arith.constant dense<0.000000e+00> : vector<112x128xf32>
    %28 = tpu.matmul %25, %27, %cst_35 {dimension_numbers = #tpu.dot_dimension_numbers<[1], [0], [0], [1], [0, 0, 1, 1], [], []>} : vector<112x12xbf16>, vector<12x128xbf16>, vector<112x128xf32> -> vector<112x128xf32>
    %29 = arith.addf %23, %28 : vector<112x128xf32>
    %c0_36 = arith.constant 0 : index
    %c0_37 = arith.constant 0 : index
    %c16_38 = arith.constant 16 : index
    %c0_39 = arith.constant 0 : index
    %30 = vector.load %arg8[%c0_36, %c0_37, %c16_38, %c0_39] : memref<1x1x128x128xf32, #tpu.memory_space<vmem>>, vector<1x1x112x128xf32>
    %31 = vector.shape_cast %30 : vector<1x1x112x128xf32> to vector<112x128xf32>
    %32 = vector.shape_cast %29 : vector<112x128xf32> to vector<1x1x112x128xf32>
    tpu.vector_store %arg8[%c0_36, %c0_37, %c16_38, %c0_39], %32 {strides = array<i32>} : memref<1x1x128x128xf32, #tpu.memory_space<vmem>>, vector<1x1x112x128xf32>,
    %c0_40 = arith.constant 0 : index
    %c0_41 = arith.constant 0 : index
    %c0_42 = arith.constant 0 : index
    %c0_43 = arith.constant 0 : index
    %33 = vector.load %arg8[%c0_40, %c0_41, %c0_42, %c0_43] : memref<1x1x128x128xf32, #tpu.memory_space<vmem>>, vector<1x1x112x128xf32>
    %34 = vector.shape_cast %33 : vector<1x1x112x128xf32> to vector<112x128xf32>
    %c0_44 = arith.constant 0 : index
    %c16_45 = arith.constant 16 : index
    %c0_46 = arith.constant 0 : index
    %35 = vector.load %arg3[%c0_44, %c16_45, %c0_46] : memref<1x128x12xbf16, #tpu.memory_space<vmem>>, vector<1x112x12xbf16>
    %36 = vector.shape_cast %35 : vector<1x112x12xbf16> to vector<112x12xbf16>
    %c2 = arith.constant 2 : index
    %c0_47 = arith.constant 0 : index
    %c0_48 = arith.constant 0 : index
    %37 = vector.load %arg6[%c2, %c0_47, %c0_48] : memref<3x12x128xbf16, #tpu.memory_space<vmem>>, vector<1x12x128xbf16>
    %38 = vector.shape_cast %37 : vector<1x12x128xbf16> to vector<12x128xbf16>
    %cst_49 = arith.constant dense<0.000000e+00> : vector<112x128xf32>
    %39 = tpu.matmul %36, %38, %cst_49 {dimension_numbers = #tpu.dot_dimension_numbers<[1], [0], [0], [1], [0, 0, 1, 1], [], []>} : vector<112x12xbf16>, vector<12x128xbf16>, vector<112x128xf32> -> vector<112x128xf32>
    %40 = arith.addf %34, %39 : vector<112x128xf32>
    %c0_50 = arith.constant 0 : index
    %c0_51 = arith.constant 0 : index
    %c0_52 = arith.constant 0 : index
    %c0_53 = arith.constant 0 : index
    %41 = vector.load %arg8[%c0_50, %c0_51, %c0_52, %c0_53] : memref<1x1x128x128xf32, #tpu.memory_space<vmem>>, vector<1x1x112x128xf32>
    %42 = vector.shape_cast %41 : vector<1x1x112x128xf32> to vector<112x128xf32>
    %43 = vector.shape_cast %40 : vector<112x128xf32> to vector<1x1x112x128xf32>
    tpu.vector_store %arg8[%c0_50, %c0_51, %c0_52, %c0_53], %43 {strides = array<i32>} : memref<1x1x128x128xf32, #tpu.memory_space<vmem>>, vector<1x1x112x128xf32>,
    %c0_54 = arith.constant 0 : index
    %c0_55 = arith.constant 0 : index
    %c112 = arith.constant 112 : index
    %c0_56 = arith.constant 0 : index
    %44 = vector.load %arg8[%c0_54, %c0_55, %c112, %c0_56] : memref<1x1x128x128xf32, #tpu.memory_space<vmem>>, vector<1x1x16x128xf32>
    %45 = vector.shape_cast %44 : vector<1x1x16x128xf32> to vector<16x128xf32>
    %c0_57 = arith.constant 0 : index
    %c0_58 = arith.constant 0 : index
    %c0_59 = arith.constant 0 : index
    %c0_60 = arith.constant 0 : index
    %46 = vector.load %arg5[%c0_57, %c0_58, %c0_59, %c0_60] : memref<1x1x16x12xbf16, #tpu.memory_space<vmem>>, vector<1x1x16x12xbf16>
    %47 = vector.shape_cast %46 : vector<1x1x16x12xbf16> to vector<16x12xbf16>
    %c2_61 = arith.constant 2 : index
    %c0_62 = arith.constant 0 : index
    %c0_63 = arith.constant 0 : index
    %48 = vector.load %arg6[%c2_61, %c0_62, %c0_63] : memref<3x12x128xbf16, #tpu.memory_space<vmem>>, vector<1x12x128xbf16>
    %49 = vector.shape_cast %48 : vector<1x12x128xbf16> to vector<12x128xbf16>
    %cst_64 = arith.constant dense<0.000000e+00> : vector<16x128xf32>
    %50 = tpu.matmul %47, %49, %cst_64 {dimension_numbers = #tpu.dot_dimension_numbers<[1], [0], [0], [1], [0, 0, 1, 1], [], []>} : vector<16x12xbf16>, vector<12x128xbf16>, vector<16x128xf32> -> vector<16x128xf32>
    %51 = arith.addf %45, %50 : vector<16x128xf32>
    %c0_65 = arith.constant 0 : index
    %c0_66 = arith.constant 0 : index
    %c112_67 = arith.constant 112 : index
    %c0_68 = arith.constant 0 : index
    %52 = vector.load %arg8[%c0_65, %c0_66, %c112_67, %c0_68] : memref<1x1x128x128xf32, #tpu.memory_space<vmem>>, vector<1x1x16x128xf32>
    %53 = vector.shape_cast %52 : vector<1x1x16x128xf32> to vector<16x128xf32>
    %54 = vector.shape_cast %51 : vector<16x128xf32> to vector<1x1x16x128xf32>
    tpu.vector_store %arg8[%c0_65, %c0_66, %c112_67, %c0_68], %54 {strides = array<i32>} : memref<1x1x128x128xf32, #tpu.memory_space<vmem>>, vector<1x1x16x128xf32>,
    return
  }
  func.func @transform_0(%arg0: i32, %arg1: i32, %arg2: i32) -> (i32, i32, i32) {
    %c0_i32 = arith.constant 0 : i32
    %c0_i32_0 = arith.constant 0 : i32
    return %arg1, %arg2, %c0_i32 : i32, i32, i32
  }
  func.func @transform_1(%arg0: i32, %arg1: i32, %arg2: i32) -> (i32, i32, i32, i32) {
    %c0_i32 = arith.constant 0 : i32
    %c0_i32_0 = arith.constant 0 : i32
    %c0_i32_1 = arith.constant 0 : i32
    return %arg1, %arg2, %c0_i32, %c0_i32_0 : i32, i32, i32, i32
  }
  func.func @transform_2(%arg0: i32, %arg1: i32, %arg2: i32) -> (i32, i32, i32, i32) {
    %c0_i32 = arith.constant 0 : i32
    %c0_i32_0 = arith.constant 0 : i32
    %c0_i32_1 = arith.constant 0 : i32
    return %arg1, %arg2, %c0_i32, %c0_i32_0 : i32, i32, i32, i32
  }
  func.func @transform_3(%arg0: i32, %arg1: i32, %arg2: i32) -> (i32, i32, i32) {
    %c0_i32 = arith.constant 0 : i32
    %c0_i32_0 = arith.constant 0 : i32
    %c0_i32_1 = arith.constant 0 : i32
    return %c0_i32, %c0_i32_0, %arg0 : i32, i32, i32
  }
  func.func @transform_4(%arg0: i32, %arg1: i32, %arg2: i32) -> (i32, i32) {
    %c0_i32 = arith.constant 0 : i32
    %c0_i32_0 = arith.constant 0 : i32
    return %c0_i32, %arg0 : i32, i32
  }
  func.func @transform_5(%arg0: i32, %arg1: i32, %arg2: i32) -> (i32, i32, i32, i32) {
    %c0_i32 = arith.constant 0 : i32
    %c0_i32_0 = arith.constant 0 : i32
    return %arg1, %arg2, %c0_i32, %arg0 : i32, i32, i32, i32
  }
}

module attributes {stable_mosaic.version = 11 : i64} {
  func.func @_upsample_conv_kernel(%arg0: i32, %arg1: i32, %arg2: i32, %arg3: memref<1x128x12xbf16, #tpu.memory_space<vmem>>, %arg4: memref<1x1x16x12xbf16, #tpu.memory_space<vmem>>, %arg5: memref<1x1x16x12xbf16, #tpu.memory_space<vmem>>, %arg6: memref<3x12x128xbf16, #tpu.memory_space<vmem>>, %arg7: memref<1x128xf32, #tpu.memory_space<vmem>>, %arg8: memref<1x1x128x128xf32, #tpu.memory_space<vmem>>) attributes {dimension_semantics = [#tpu.dimension_semantics<parallel>, #tpu.dimension_semantics<parallel>, #tpu.dimension_semantics<parallel>], iteration_bounds = array<i64: 1, 2, 2>, scalar_prefetch = 0 : i64, scratch_operands = 0 : i64, tpu.core_type = #tpu.core_type<tc>, window_params = [{transform_indices = @transform_0, window_bounds = array<i64: 1, 128, 12>}, {transform_indices = @transform_1, window_bounds = array<i64: 1, 1, 16, 12>}, {transform_indices = @transform_2, window_bounds = array<i64: 1, 1, 16, 12>}, {transform_indices = @transform_3, window_bounds = array<i64: 3, 12, 128>}, {transform_indices = @transform_4, window_bounds = array<i64: 1, 128>}, {transform_indices = @transform_5, window_bounds = array<i64: 1, 1, 128, 128>}]} {
    %c0 = arith.constant 0 : index
    %c0_0 = arith.constant 0 : index
    %c0_1 = arith.constant 0 : index
    %0 = vector.load %arg3[%c0, %c0_0, %c0_1] : memref<1x128x12xbf16, #tpu.memory_space<vmem>>, vector<1x128x12xbf16>
    %1 = vector.shape_cast %0 : vector<1x128x12xbf16> to vector<128x12xbf16>
    %c1 = arith.constant 1 : index
    %c0_2 = arith.constant 0 : index
    %c0_3 = arith.constant 0 : index
    %2 = vector.load %arg6[%c1, %c0_2, %c0_3] : memref<3x12x128xbf16, #tpu.memory_space<vmem>>, vector<1x12x128xbf16>
    %3 = vector.shape_cast %2 : vector<1x12x128xbf16> to vector<12x128xbf16>
    %cst = arith.constant dense<0.000000e+00> : vector<128x128xf32>
    %4 = tpu.matmul %1, %3, %cst {dimension_numbers = #tpu.dot_dimension_numbers<[1], [0], [0], [1], [0, 0, 1, 1], [], []>} : vector<128x12xbf16>, vector<12x128xbf16>, vector<128x128xf32> -> vector<128x128xf32>
    %c0_4 = arith.constant 0 : index
    %c0_5 = arith.constant 0 : index
    %5 = vector.load %arg7[%c0_4, %c0_5] : memref<1x128xf32, #tpu.memory_space<vmem>>, vector<1x128xf32>
    %6 = vector.broadcast %5 : vector<1x128xf32> to vector<128x128xf32>
    %7 = arith.addf %4, %6 : vector<128x128xf32>
    %c0_6 = arith.constant 0 : index
    %c0_7 = arith.constant 0 : index
    %c0_8 = arith.constant 0 : index
    %c0_9 = arith.constant 0 : index
    %8 = vector.load %arg8[%c0_6, %c0_7, %c0_8, %c0_9] : memref<1x1x128x128xf32, #tpu.memory_space<vmem>>, vector<1x1x128x128xf32>
    %9 = vector.shape_cast %8 : vector<1x1x128x128xf32> to vector<128x128xf32>
    %10 = vector.shape_cast %7 : vector<128x128xf32> to vector<1x1x128x128xf32>
    tpu.vector_store %arg8[%c0_6, %c0_7, %c0_8, %c0_9], %10 {strides = array<i32>} : memref<1x1x128x128xf32, #tpu.memory_space<vmem>>, vector<1x1x128x128xf32>,
    %c0_10 = arith.constant 0 : index
    %c0_11 = arith.constant 0 : index
    %c0_12 = arith.constant 0 : index
    %c0_13 = arith.constant 0 : index
    %11 = vector.load %arg8[%c0_10, %c0_11, %c0_12, %c0_13] : memref<1x1x128x128xf32, #tpu.memory_space<vmem>>, vector<1x1x16x128xf32>
    %12 = vector.shape_cast %11 : vector<1x1x16x128xf32> to vector<16x128xf32>
    %c0_14 = arith.constant 0 : index
    %c0_15 = arith.constant 0 : index
    %c0_16 = arith.constant 0 : index
    %c0_17 = arith.constant 0 : index
    %13 = vector.load %arg4[%c0_14, %c0_15, %c0_16, %c0_17] : memref<1x1x16x12xbf16, #tpu.memory_space<vmem>>, vector<1x1x16x12xbf16>
    %14 = vector.shape_cast %13 : vector<1x1x16x12xbf16> to vector<16x12xbf16>
    %c0_18 = arith.constant 0 : index
    %c0_19 = arith.constant 0 : index
    %c0_20 = arith.constant 0 : index
    %15 = vector.load %arg6[%c0_18, %c0_19, %c0_20] : memref<3x12x128xbf16, #tpu.memory_space<vmem>>, vector<1x12x128xbf16>
    %16 = vector.shape_cast %15 : vector<1x12x128xbf16> to vector<12x128xbf16>
    %cst_21 = arith.constant dense<0.000000e+00> : vector<16x128xf32>
    %17 = tpu.matmul %14, %16, %cst_21 {dimension_numbers = #tpu.dot_dimension_numbers<[1], [0], [0], [1], [0, 0, 1, 1], [], []>} : vector<16x12xbf16>, vector<12x128xbf16>, vector<16x128xf32> -> vector<16x128xf32>
    %18 = arith.addf %12, %17 : vector<16x128xf32>
    %c0_22 = arith.constant 0 : index
    %c0_23 = arith.constant 0 : index
    %c0_24 = arith.constant 0 : index
    %c0_25 = arith.constant 0 : index
    %19 = vector.load %arg8[%c0_22, %c0_23, %c0_24, %c0_25] : memref<1x1x128x128xf32, #tpu.memory_space<vmem>>, vector<1x1x16x128xf32>
    %20 = vector.shape_cast %19 : vector<1x1x16x128xf32> to vector<16x128xf32>
    %21 = vector.shape_cast %18 : vector<16x128xf32> to vector<1x1x16x128xf32>
    tpu.vector_store %arg8[%c0_22, %c0_23, %c0_24, %c0_25], %21 {strides = array<i32>} : memref<1x1x128x128xf32, #tpu.memory_space<vmem>>, vector<1x1x16x128xf32>,
    %c0_26 = arith.constant 0 : index
    %c0_27 = arith.constant 0 : index
    %c16 = arith.constant 16 : index
    %c0_28 = arith.constant 0 : index
    %22 = vector.load %arg8[%c0_26, %c0_27, %c16, %c0_28] : memref<1x1x128x128xf32, #tpu.memory_space<vmem>>, vector<1x1x112x128xf32>
    %23 = vector.shape_cast %22 : vector<1x1x112x128xf32> to vector<112x128xf32>
    %c0_29 = arith.constant 0 : index
    %c0_30 = arith.constant 0 : index
    %c0_31 = arith.constant 0 : index
    %24 = vector.load %arg3[%c0_29, %c0_30, %c0_31] : memref<1x128x12xbf16, #tpu.memory_space<vmem>>, vector<1x112x12xbf16>
    %25 = vector.shape_cast %24 : vector<1x112x12xbf16> to vector<112x12xbf16>
    %c0_32 = arith.constant 0 : index
    %c0_33 = arith.constant 0 : index
    %c0_34 = arith.constant 0 : index
    %26 = vector.load %arg6[%c0_32, %c0_33, %c0_34] : memref<3x12x128xbf16, #tpu.memory_space<vmem>>, vector<1x12x128xbf16>
    %27 = vector.shape_cast %26 : vector<1x12x128xbf16> to vector<12x128xbf16>
    %cst_35 = arith.constant dense<0.000000e+00> : vector<112x128xf32>
    %28 = tpu.matmul %25, %27, %cst_35 {dimension_numbers = #tpu.dot_dimension_numbers<[1], [0], [0], [1], [0, 0, 1, 1], [], []>} : vector<112x12xbf16>, vector<12x128xbf16>, vector<112x128xf32> -> vector<112x128xf32>
    %29 = arith.addf %23, %28 : vector<112x128xf32>
    %c0_36 = arith.constant 0 : index
    %c0_37 = arith.constant 0 : index
    %c16_38 = arith.constant 16 : index
    %c0_39 = arith.constant 0 : index
    %30 = vector.load %arg8[%c0_36, %c0_37, %c16_38, %c0_39] : memref<1x1x128x128xf32, #tpu.memory_space<vmem>>, vector<1x1x112x128xf32>
    %31 = vector.shape_cast %30 : vector<1x1x112x128xf32> to vector<112x128xf32>
    %32 = vector.shape_cast %29 : vector<112x128xf32> to vector<1x1x112x128xf32>
    tpu.vector_store %arg8[%c0_36, %c0_37, %c16_38, %c0_39], %32 {strides = array<i32>} : memref<1x1x128x128xf32, #tpu.memory_space<vmem>>, vector<1x1x112x128xf32>,
    %c0_40 = arith.constant 0 : index
    %c0_41 = arith.constant 0 : index
    %c0_42 = arith.constant 0 : index
    %c0_43 = arith.constant 0 : index
    %33 = vector.load %arg8[%c0_40, %c0_41, %c0_42, %c0_43] : memref<1x1x128x128xf32, #tpu.memory_space<vmem>>, vector<1x1x112x128xf32>
    %34 = vector.shape_cast %33 : vector<1x1x112x128xf32> to vector<112x128xf32>
    %c0_44 = arith.constant 0 : index
    %c16_45 = arith.constant 16 : index
    %c0_46 = arith.constant 0 : index
    %35 = vector.load %arg3[%c0_44, %c16_45, %c0_46] : memref<1x128x12xbf16, #tpu.memory_space<vmem>>, vector<1x112x12xbf16>
    %36 = vector.shape_cast %35 : vector<1x112x12xbf16> to vector<112x12xbf16>
    %c2 = arith.constant 2 : index
    %c0_47 = arith.constant 0 : index
    %c0_48 = arith.constant 0 : index
    %37 = vector.load %arg6[%c2, %c0_47, %c0_48] : memref<3x12x128xbf16, #tpu.memory_space<vmem>>, vector<1x12x128xbf16>
    %38 = vector.shape_cast %37 : vector<1x12x128xbf16> to vector<12x128xbf16>
    %cst_49 = arith.constant dense<0.000000e+00> : vector<112x128xf32>
    %39 = tpu.matmul %36, %38, %cst_49 {dimension_numbers = #tpu.dot_dimension_numbers<[1], [0], [0], [1], [0, 0, 1, 1], [], []>} : vector<112x12xbf16>, vector<12x128xbf16>, vector<112x128xf32> -> vector<112x128xf32>
    %40 = arith.addf %34, %39 : vector<112x128xf32>
    %c0_50 = arith.constant 0 : index
    %c0_51 = arith.constant 0 : index
    %c0_52 = arith.constant 0 : index
    %c0_53 = arith.constant 0 : index
    %41 = vector.load %arg8[%c0_50, %c0_51, %c0_52, %c0_53] : memref<1x1x128x128xf32, #tpu.memory_space<vmem>>, vector<1x1x112x128xf32>
    %42 = vector.shape_cast %41 : vector<1x1x112x128xf32> to vector<112x128xf32>
    %43 = vector.shape_cast %40 : vector<112x128xf32> to vector<1x1x112x128xf32>
    tpu.vector_store %arg8[%c0_50, %c0_51, %c0_52, %c0_53], %43 {strides = array<i32>} : memref<1x1x128x128xf32, #tpu.memory_space<vmem>>, vector<1x1x112x128xf32>,
    %c0_54 = arith.constant 0 : index
    %c0_55 = arith.constant 0 : index
    %c112 = arith.constant 112 : index
    %c0_56 = arith.constant 0 : index
    %44 = vector.load %arg8[%c0_54, %c0_55, %c112, %c0_56] : memref<1x1x128x128xf32, #tpu.memory_space<vmem>>, vector<1x1x16x128xf32>
    %45 = vector.shape_cast %44 : vector<1x1x16x128xf32> to vector<16x128xf32>
    %c0_57 = arith.constant 0 : index
    %c0_58 = arith.constant 0 : index
    %c0_59 = arith.constant 0 : index
    %c0_60 = arith.constant 0 : index
    %46 = vector.load %arg5[%c0_57, %c0_58, %c0_59, %c0_60] : memref<1x1x16x12xbf16, #tpu.memory_space<vmem>>, vector<1x1x16x12xbf16>
    %47 = vector.shape_cast %46 : vector<1x1x16x12xbf16> to vector<16x12xbf16>
    %c2_61 = arith.constant 2 : index
    %c0_62 = arith.constant 0 : index
    %c0_63 = arith.constant 0 : index
    %48 = vector.load %arg6[%c2_61, %c0_62, %c0_63] : memref<3x12x128xbf16, #tpu.memory_space<vmem>>, vector<1x12x128xbf16>
    %49 = vector.shape_cast %48 : vector<1x12x128xbf16> to vector<12x128xbf16>
    %cst_64 = arith.constant dense<0.000000e+00> : vector<16x128xf32>
    %50 = tpu.matmul %47, %49, %cst_64 {dimension_numbers = #tpu.dot_dimension_numbers<[1], [0], [0], [1], [0, 0, 1, 1], [], []>} : vector<16x12xbf16>, vector<12x128xbf16>, vector<16x128xf32> -> vector<16x128xf32>
    %51 = arith.addf %45, %50 : vector<16x128xf32>
    %c0_65 = arith.constant 0 : index
    %c0_66 = arith.constant 0 : index
    %c112_67 = arith.constant 112 : index
    %c0_68 = arith.constant 0 : index
    %52 = vector.load %arg8[%c0_65, %c0_66, %c112_67, %c0_68] : memref<1x1x128x128xf32, #tpu.memory_space<vmem>>, vector<1x1x16x128xf32>
    %53 = vector.shape_cast %52 : vector<1x1x16x128xf32> to vector<16x128xf32>
    %54 = vector.shape_cast %51 : vector<16x128xf32> to vector<1x1x16x128xf32>
    tpu.vector_store %arg8[%c0_65, %c0_66, %c112_67, %c0_68], %54 {strides = array<i32>} : memref<1x1x128x128xf32, #tpu.memory_space<vmem>>, vector<1x1x16x128xf32>,
    return
  }
  func.func @transform_0(%arg0: i32, %arg1: i32, %arg2: i32) -> (i32, i32, i32) {
    %c0_i32 = arith.constant 0 : i32
    %c0_i32_0 = arith.constant 0 : i32
    return %arg1, %arg2, %c0_i32 : i32, i32, i32
  }
  func.func @transform_1(%arg0: i32, %arg1: i32, %arg2: i32) -> (i32, i32, i32, i32) {
    %c0_i32 = arith.constant 0 : i32
    %c0_i32_0 = arith.constant 0 : i32
    %c0_i32_1 = arith.constant 0 : i32
    return %arg1, %arg2, %c0_i32, %c0_i32_0 : i32, i32, i32, i32
  }
  func.func @transform_2(%arg0: i32, %arg1: i32, %arg2: i32) -> (i32, i32, i32, i32) {
    %c0_i32 = arith.constant 0 : i32
    %c0_i32_0 = arith.constant 0 : i32
    %c0_i32_1 = arith.constant 0 : i32
    return %arg1, %arg2, %c0_i32, %c0_i32_0 : i32, i32, i32, i32
  }
  func.func @transform_3(%arg0: i32, %arg1: i32, %arg2: i32) -> (i32, i32, i32) {
    %c0_i32 = arith.constant 0 : i32
    %c0_i32_0 = arith.constant 0 : i32
    %c0_i32_1 = arith.constant 0 : i32
    return %c0_i32, %c0_i32_0, %arg0 : i32, i32, i32
  }
  func.func @transform_4(%arg0: i32, %arg1: i32, %arg2: i32) -> (i32, i32) {
    %c0_i32 = arith.constant 0 : i32
    %c0_i32_0 = arith.constant 0 : i32
    return %c0_i32, %arg0 : i32, i32
  }
  func.func @transform_5(%arg0: i32, %arg1: i32, %arg2: i32) -> (i32, i32, i32, i32) {
    %c0_i32 = arith.constant 0 : i32
    %c0_i32_0 = arith.constant 0 : i32
    return %arg1, %arg2, %c0_i32, %arg0 : i32, i32, i32, i32
  }
}

</mosaic_0001>

<llo_original>
// kernel: tpu_custom_call.1
$region0: #{tpu_custom_call.1}
  #allocation0 [shape = 'u32[]', space=smem, size = 0x4, offset = 0x4, fixed_abs, tag = 'smem constant byte address 0x4 - core index']
  #allocation1 [shape = 'u32[144,128]{1,0:T(1,128)}', space=vmem, size = 0x12000, scoped, tag = 'internal scratch']
  %s0 = inlined_call_operand.vmem [shape: bf16[2,256,12], index: 0, kind: input, shape index: {}]
  %s1 = inlined_call_operand.vmem [shape: bf16[2,2,16,12], index: 1, kind: input, shape index: {}]
  %s2 = inlined_call_operand.vmem [shape: bf16[2,2,16,12], index: 2, kind: input, shape index: {}]
  %s3 = inlined_call_operand.vmem [shape: bf16[3,12,128], index: 3, kind: input, shape index: {}]
  %s4 = inlined_call_operand.vmem [shape: f32[1,128], index: 4, kind: input, shape index: {}]
  %s5 = inlined_call_operand.hbm [shape: f32[2,2,128,128], index: 5, kind: output, shape index: {}]
  %s6 = sld [smem:[#allocation0]]
  $region53: #{tpu_custom_call.1} parent=0
    _
  %s8 = ssub.s32 1, %s6
  %s9 = scalar_select 0, %s8, %s6
  $region1: #{tpu_custom_call.1} parent=0
    #allocation2 [shape = 'u8[131072]{0}', space=vmem, size = 0x20000, scoped, tag = 'output window, operand 0']
    #allocation3 [shape = 's32[2]{0}', space=sflag, size = 0x8, scoped, tag = 'scoped memory for tpu_custom_call.1']
    %10 = vsyncpa [#allocation3], 0
    %s11 = scalar_lea.sflag [#allocation3], 1
    %12 = vsyncpa %s11, 0
    loop: start=0, step=1, limit=6
    $region2: #{tpu_custom_call.1} parent=1 // loop_pre_header
      _
    $region3: #{tpu_custom_call.1} parent=1 // loop_header
      %s14 = sphi 0, %s18
      %p15 = scmp.ge.s32.totalorder %s14, 6
      %s21 = sphi 0, %s40
      %s22 = sphi 0, %s36
      %s23 = sphi 0, %s32
      %s24 = sphi 0, %s21
      %s25 = sphi 0, %s22
      %s26 = sphi 0, %s23
      %s27 = sphi 0, %s24
      %s28 = sphi 0, %s25
      %s29 = sphi 0, %s26
      %s45 = sphi 0, %s47
      %s48 = sphi 0, %s45
      %s49 = sphi 0, %s48
      %s65 = sphi 0, %s49
      %s73 = sphi 0, %s75
      %s76 = sphi 0, %s73
      %s77 = sphi 0, %s76
      %s93 = sphi 0, %s77
      %s101 = sphi 0, %s103
      %s104 = sphi 0, %s101
      %s105 = sphi 0, %s104
      %s121 = sphi 0, %s105
      %s127 = sphi 0, %s129
      %s130 = sphi 0, %s127
      %s131 = sphi 0, %s130
      %s147 = sphi 0, %s131
      %s153 = sphi 0, %s155
      %s156 = sphi 0, %s153
      %s157 = sphi 0, %s156
      %s173 = sphi 0, %s157
      %s183 = sphi 0, %s185
      %s186 = sphi 0, %s183
      %s187 = sphi 0, %s186
      %s203 = sphi 0, %s187
    $region4: #{tpu_custom_call.1} parent=1 // loop_header_branch
      %17 = sbr.rel (%p15) target = $region8
    $region5: #{tpu_custom_call.1} parent=1 // loop_body
      %s19 = ssub.s32 %s14, 1
      %s20 = ssub.s32 %s14, 2
      %s30 = sadd.s32 1, %s23
      %p31 = scmp.ge.s32.totalorder %s30, 2
      %s32 = scalar_select %p31, 0, %s30
      %s33 = sadd.s32 1, %s22
      %s34 = scalar_select %p31, %s33, %s22
      %p35 = scmp.ge.s32.totalorder %s34, 2
      %s36 = scalar_select %p35, 0, %s34
      %s37 = sadd.s32 1, %s21
      %s38 = scalar_select %p35, %s37, %s21
      %p39 = scmp.ge.s32.totalorder %s38, 1
      %s40 = scalar_select %p39, 0, %s38
      %s41 = ssub.s32 %s22, %s36
      %s42 = ssub.s32 %s23, %s32
      %s43 = sor.u32 %s41, %s42
      %p44 = scmp.eq.s32.totalorder %s43, 0
      %s46 = sadd.s32 %s45, 1
      %s47 = scalar_select %p44, %s45, %s46
      %p50 = pneg %p44
      %p51 = scmp.eq.s32.totalorder %s14, 3
      %p52 = por %p50, %p51
      %p53 = scmp.ne.s32.totalorder %s45, %s48
      %p54 = scmp.eq.s32.totalorder %s14, 0
      %p55 = por %p53, %p54
      %p56 = scmp.ne.s32.totalorder %s45, %s48
      %p57 = scmp.eq.s32.totalorder %s19, 3
      %p58 = por %p56, %p57
      %p59 = scmp.ne.s32.totalorder %s48, %s49
      %p60 = scmp.eq.s32.totalorder %s19, 0
      %p61 = por %p59, %p60
      %p62 = scmp.ne.s32.totalorder %s48, %s49
      %p63 = scmp.eq.s32.totalorder %s20, 3
      %p64 = por %p62, %p63
      %p66 = scmp.ne.s32.totalorder %s49, %s65
      %p67 = scmp.eq.s32.totalorder %s20, 0
      %p68 = por %p66, %p67
      %s69 = ssub.s32 %s22, %s36
      %s70 = ssub.s32 %s23, %s32
      %s71 = sor.u32 %s69, %s70
      %p72 = scmp.eq.s32.totalorder %s71, 0
      %s74 = sadd.s32 %s73, 1
      %s75 = scalar_select %p72, %s73, %s74
      %p78 = pneg %p72
      %p79 = scmp.eq.s32.totalorder %s14, 3
      %p80 = por %p78, %p79
      %p81 = scmp.ne.s32.totalorder %s73, %s76
      %p82 = scmp.eq.s32.totalorder %s14, 0
      %p83 = por %p81, %p82
      %p84 = scmp.ne.s32.totalorder %s73, %s76
      %p85 = scmp.eq.s32.totalorder %s19, 3
      %p86 = por %p84, %p85
      %p87 = scmp.ne.s32.totalorder %s76, %s77
      %p88 = scmp.eq.s32.totalorder %s19, 0
      %p89 = por %p87, %p88
      %p90 = scmp.ne.s32.totalorder %s76, %s77
      %p91 = scmp.eq.s32.totalorder %s20, 3
      %p92 = por %p90, %p91
      %p94 = scmp.ne.s32.totalorder %s77, %s93
      %p95 = scmp.eq.s32.totalorder %s20, 0
      %p96 = por %p94, %p95
      %s97 = ssub.s32 %s22, %s36
      %s98 = ssub.s32 %s23, %s32
      %s99 = sor.u32 %s97, %s98
      %p100 = scmp.eq.s32.totalorder %s99, 0
      %s102 = sadd.s32 %s101, 1
      %s103 = scalar_select %p100, %s101, %s102
      %p106 = pneg %p100
      %p107 = scmp.eq.s32.totalorder %s14, 3
      %p108 = por %p106, %p107
      %p109 = scmp.ne.s32.totalorder %s101, %s104
      %p110 = scmp.eq.s32.totalorder %s14, 0
      %p111 = por %p109, %p110
      %p112 = scmp.ne.s32.totalorder %s101, %s104
      %p113 = scmp.eq.s32.totalorder %s19, 3
      %p114 = por %p112, %p113
      %p115 = scmp.ne.s32.totalorder %s104, %s105
      %p116 = scmp.eq.s32.totalorder %s19, 0
      %p117 = por %p115, %p116
      %p118 = scmp.ne.s32.totalorder %s104, %s105
      %p119 = scmp.eq.s32.totalorder %s20, 3
      %p120 = por %p118, %p119
      %p122 = scmp.ne.s32.totalorder %s105, %s121
      %p123 = scmp.eq.s32.totalorder %s20, 0
      %p124 = por %p122, %p123
      %s125 = ssub.s32 %s21, %s40
      %p126 = scmp.eq.s32.totalorder %s125, 0
      %s128 = sadd.s32 %s127, 1
      %s129 = scalar_select %p126, %s127, %s128
      %p132 = pneg %p126
      %p133 = scmp.eq.s32.totalorder %s14, 3
      %p134 = por %p132, %p133
      %p135 = scmp.ne.s32.totalorder %s127, %s130
      %p136 = scmp.eq.s32.totalorder %s14, 0
      %p137 = por %p135, %p136
      %p138 = scmp.ne.s32.totalorder %s127, %s130
      %p139 = scmp.eq.s32.totalorder %s19, 3
      %p140 = por %p138, %p139
      %p141 = scmp.ne.s32.totalorder %s130, %s131
      %p142 = scmp.eq.s32.totalorder %s19, 0
      %p143 = por %p141, %p142
      %p144 = scmp.ne.s32.totalorder %s130, %s131
      %p145 = scmp.eq.s32.totalorder %s20, 3
      %p146 = por %p144, %p145
      %p148 = scmp.ne.s32.totalorder %s131, %s147
      %p149 = scmp.eq.s32.totalorder %s20, 0
      %p150 = por %p148, %p149
      %s151 = ssub.s32 %s21, %s40
      %p152 = scmp.eq.s32.totalorder %s151, 0
      %s154 = sadd.s32 %s153, 1
      %s155 = scalar_select %p152, %s153, %s154
      %p158 = pneg %p152
      %p159 = scmp.eq.s32.totalorder %s14, 3
      %p160 = por %p158, %p159
      %p161 = scmp.ne.s32.totalorder %s153, %s156
      %p162 = scmp.eq.s32.totalorder %s14, 0
      %p163 = por %p161, %p162
      %p164 = scmp.ne.s32.totalorder %s153, %s156
      %p165 = scmp.eq.s32.totalorder %s19, 3
      %p166 = por %p164, %p165
      %p167 = scmp.ne.s32.totalorder %s156, %s157
      %p168 = scmp.eq.s32.totalorder %s19, 0
      %p169 = por %p167, %p168
      %p170 = scmp.ne.s32.totalorder %s156, %s157
      %p171 = scmp.eq.s32.totalorder %s20, 3
      %p172 = por %p170, %p171
      %p174 = scmp.ne.s32.totalorder %s157, %s173
      %p175 = scmp.eq.s32.totalorder %s20, 0
      %p176 = por %p174, %p175
      %s177 = ssub.s32 %s22, %s36
      %s178 = ssub.s32 %s23, %s32
      %s179 = sor.u32 %s177, %s178
      %s180 = ssub.s32 %s21, %s40
      %s181 = sor.u32 %s179, %s180
      %p182 = scmp.eq.s32.totalorder %s181, 0
      %s184 = sadd.s32 %s183, 1
      %s185 = scalar_select %p182, %s183, %s184
      %p188 = pneg %p182
      %p189 = scmp.eq.s32.totalorder %s14, 3
      %p190 = por %p188, %p189
      %p191 = scmp.ne.s32.totalorder %s183, %s186
      %p192 = scmp.eq.s32.totalorder %s14, 0
      %p193 = por %p191, %p192
      %p194 = scmp.ne.s32.totalorder %s183, %s186
      %p195 = scmp.eq.s32.totalorder %s19, 3
      %p196 = por %p194, %p195
      %p197 = scmp.ne.s32.totalorder %s186, %s187
      %p198 = scmp.eq.s32.totalorder %s19, 0
      %p199 = por %p197, %p198
      %p200 = scmp.ne.s32.totalorder %s186, %s187
      %p201 = scmp.eq.s32.totalorder %s20, 3
      %p202 = por %p200, %p201
      %p204 = scmp.ne.s32.totalorder %s187, %s203
      %p205 = scmp.eq.s32.totalorder %s20, 0
      %p206 = por %p204, %p205
      %p207 = scmp.le.s32.totalorder 1, %s14
      %p208 = scmp.lt.s32.totalorder %s14, 5
      %p209 = pnand %p207, %p208
      %p210 = pneg %p209
      // Predicated region
      $region9: #{tpu_custom_call.1} parent=5 // pred_check
        _
      $region10: #{tpu_custom_call.1} parent=5 // pred_check_branch
        %212 = sbr.rel (%p209) target = $region12
      $region11: #{tpu_custom_call.1} parent=5 // pred_region
        %s213 = ssub.s32 %s14, 1
        // Predicated region
        $region13: #{tpu_custom_call.1} parent=11 // pred_check
          %p214 = pneg %p143
        $region14: #{tpu_custom_call.1} parent=11 // pred_check_branch
          %216 = sbr.rel (%p214) target = $region16
        $region15: #{tpu_custom_call.1} parent=11 // pred_region
          %p217 = scmp.lt.s32.totalorder %s24, 0
          %s218 = scalar_select %p217, %s24, 0
          %s219 = smul.addr %s218, 4
          %s220 = scalar_lea.vmem %s3, %s219
        $region16: #{tpu_custom_call.1} parent=11 // pred_fallthru
          _
        // Predicated region
        $region17: #{tpu_custom_call.1} parent=11 // pred_check
          %p221 = pneg %p169
        $region18: #{tpu_custom_call.1} parent=11 // pred_check_branch
          %223 = sbr.rel (%p221) target = $region20
        $region19: #{tpu_custom_call.1} parent=11 // pred_region
          %p224 = scmp.lt.s32.totalorder %s24, 0
          %s225 = scalar_select %p224, %s24, 0
          %s226 = scalar_lea.vmem %s4, %s225
        $region20: #{tpu_custom_call.1} parent=11 // pred_fallthru
          _
      $region12: #{tpu_custom_call.1} parent=5 // pred_fallthru
        _
      %p227 = scmp.lt.s32.totalorder %s14, 4
      // Predicated region
      $region21: #{tpu_custom_call.1} parent=5 // pred_check
        %p228 = pneg %p227
      $region22: #{tpu_custom_call.1} parent=5 // pred_check_branch
        %230 = sbr.rel (%p228) target = $region24
      $region23: #{tpu_custom_call.1} parent=5 // pred_region
        // Predicated region
        $region25: #{tpu_custom_call.1} parent=23 // pred_check
          %p231 = pneg %p55
        $region26: #{tpu_custom_call.1} parent=23 // pred_check_branch
          %233 = sbr.rel (%p231) target = $region28
        $region27: #{tpu_custom_call.1} parent=23 // pred_region
          %s234 = smul.u32 16, %s23
          %p235 = scmp.lt.s32.totalorder %s22, 1
          %s236 = scalar_select %p235, %s22, 1
          %p237 = scmp.lt.s32.totalorder %s234, 31
          %s238 = scalar_select %p237, %s234, 31
          %s239 = smul.addr %s236, 32
          %s240 = sadd.s32 %s238, %s239
          %s241 = smul.addr %s240, 4
          %s242 = scalar_lea.vmem %s0, %s241
          %s243 = smul.u32 16, %s23
        $region28: #{tpu_custom_call.1} parent=23 // pred_fallthru
          _
        // Predicated region
        $region29: #{tpu_custom_call.1} parent=23 // pred_check
          %p244 = pneg %p83
        $region30: #{tpu_custom_call.1} parent=23 // pred_check_branch
          %246 = sbr.rel (%p244) target = $region32
        $region31: #{tpu_custom_call.1} parent=23 // pred_region
          %p247 = scmp.lt.s32.totalorder %s22, 1
          %s248 = scalar_select %p247, %s22, 1
          %p249 = scmp.lt.s32.totalorder %s23, 1
          %s250 = scalar_select %p249, %s23, 1
          %s251 = smul.addr %s250, 2
          %s252 = smul.addr %s248, 4
          %s253 = sadd.s32 %s251, %s252
          %s254 = smul.addr %s253, 4
          %s255 = scalar_lea.vmem %s1, %s254
        $region32: #{tpu_custom_call.1} parent=23 // pred_fallthru
          _
        // Predicated region
        $region33: #{tpu_custom_call.1} parent=23 // pred_check
          %p256 = pneg %p111
        $region34: #{tpu_custom_call.1} parent=23 // pred_check_branch
          %258 = sbr.rel (%p256) target = $region36
        $region35: #{tpu_custom_call.1} parent=23 // pred_region
          %p259 = scmp.lt.s32.totalorder %s22, 1
          %s260 = scalar_select %p259, %s22, 1
          %p261 = scmp.lt.s32.totalorder %s23, 1
          %s262 = scalar_select %p261, %s23, 1
          %s263 = smul.addr %s262, 2
          %s264 = smul.addr %s260, 4
          %s265 = sadd.s32 %s263, %s264
          %s266 = smul.addr %s265, 4
          %s267 = scalar_lea.vmem %s2, %s266
        $region36: #{tpu_custom_call.1} parent=23 // pred_fallthru
          _
      $region24: #{tpu_custom_call.1} parent=5 // pred_fallthru
        _
      %p268 = scmp.le.s32.totalorder 1, %s14
      %p269 = scmp.lt.s32.totalorder %s14, 5
      %p270 = pnand %p268, %p269
      %p271 = pneg %p270
      // Predicated region
      $region37: #{tpu_custom_call.1} parent=5 // pred_check
        _
      $region38: #{tpu_custom_call.1} parent=5 // pred_check_branch
        %273 = sbr.rel (%p270) target = $region40
      $region39: #{tpu_custom_call.1} parent=5 // pred_region
        %s274 = ssub.s32 %s14, 1
        %s275 = smul.u32 16, %s26
        %p276 = scmp.lt.s32.totalorder %s25, 1
        %s277 = scalar_select %p276, %s25, 1
        %p278 = scmp.lt.s32.totalorder %s275, 31
        %s279 = scalar_select %p278, %s275, 31
        %s280 = smul.addr %s277, 32
        %s281 = sadd.s32 %s279, %s280
        %s282 = smul.addr %s281, 4
        %s283 = scalar_lea.vmem %s0, %s282
        %p284 = pneg %p61
        %p285 = pneg %p58
        %p286 = scmp.lt.s32.totalorder %s25, 1
        %s287 = scalar_select %p286, %s25, 1
        %p288 = scmp.lt.s32.totalorder %s26, 1
        %s289 = scalar_select %p288, %s26, 1
        %s290 = smul.addr %s289, 2
        %s291 = smul.addr %s287, 4
        %s292 = sadd.s32 %s290, %s291
        %s293 = smul.addr %s292, 4
        %s294 = scalar_lea.vmem %s1, %s293
        %p295 = pneg %p89
        %p296 = pneg %p86
        %p297 = scmp.lt.s32.totalorder %s25, 1
        %s298 = scalar_select %p297, %s25, 1
        %p299 = scmp.lt.s32.totalorder %s26, 1
        %s300 = scalar_select %p299, %s26, 1
        %s301 = smul.addr %s300, 2
        %s302 = smul.addr %s298, 4
        %s303 = sadd.s32 %s301, %s302
        %s304 = smul.addr %s303, 4
        %s305 = scalar_lea.vmem %s2, %s304
        %p306 = pneg %p117
        %p307 = pneg %p114
        %p308 = scmp.lt.s32.totalorder %s24, 0
        %s309 = scalar_select %p308, %s24, 0
        %s310 = smul.addr %s309, 4
        %s311 = scalar_lea.vmem %s3, %s310
        %p312 = pneg %p143
        %p313 = pneg %p140
        %p314 = scmp.lt.s32.totalorder %s24, 0
        %s315 = scalar_select %p314, %s24, 0
        %s316 = scalar_lea.vmem %s4, %s315
        %p317 = pneg %p169
        %p318 = pneg %p166
        %p319 = pneg %p199
        %p320 = pneg %p196
        %s321 = sand.u32 %s186, 1
        %s322 = scalar_lea.sflag [#allocation3], %s321
        %s323 = sand.u32 %s186, 1
        %s324 = smul.addr %s323, 128
        %s325 = scalar_lea.vmem [#allocation2], %s324
        %s326 = smul.u32 16, %s26
        %p327 = scmp.lt.s32.totalorder %s25, 1
        %s328 = scalar_select %p327, %s25, 1
        %p329 = scmp.lt.s32.totalorder %s326, 31
        %s330 = scalar_select %p329, %s326, 31
        %s331 = smul.addr %s328, 32
        %s332 = sadd.s32 %s330, %s331
        %s333 = smul.addr %s332, 4
        %s334 = scalar_lea.vmem %s0, %s333
        %s335 = smul.u32 16, %s26
        %p336 = scmp.lt.s32.totalorder %s25, 1
        %s337 = scalar_select %p336, %s25, 1
        %p338 = scmp.lt.s32.totalorder %s26, 1
        %s339 = scalar_select %p338, %s26, 1
        %s340 = smul.addr %s339, 2
        %s341 = smul.addr %s337, 4
        %s342 = sadd.s32 %s340, %s341
        %s343 = smul.addr %s342, 4
        %s344 = scalar_lea.vmem %s1, %s343
        %p345 = scmp.lt.s32.totalorder %s25, 1
        %s346 = scalar_select %p345, %s25, 1
        %p347 = scmp.lt.s32.totalorder %s26, 1
        %s348 = scalar_select %p347, %s26, 1
        %s349 = smul.addr %s348, 2
        %s350 = smul.addr %s346, 4
        %s351 = sadd.s32 %s349, %s350
        %s352 = smul.addr %s351, 4
        %s353 = scalar_lea.vmem %s2, %s352
        %p354 = scmp.lt.s32.totalorder %s24, 0
        %s355 = scalar_select %p354, %s24, 0
        %s356 = smul.addr %s355, 4
        %s357 = scalar_lea.vmem %s3, %s356
        %p358 = scmp.lt.s32.totalorder %s24, 0
        %s359 = scalar_select %p358, %s24, 0
        %s360 = scalar_lea.vmem %s4, %s359
        %v362 = vld [vmem:[%s334] sm:$0xf]
        %v363 = vld [vmem:[%s334 + $0x4] sm:$0xf]
        %v364 = vld [vmem:[%s334 + $0x8] sm:$0xf]
        %v365 = vld [vmem:[%s334 + $0xc] sm:$0xf]
        %v366 = vld [vmem:[%s334 + $0x10] sm:$0xf]
        %v367 = vld [vmem:[%s334 + $0x14] sm:$0xf]
        %v368 = vld [vmem:[%s334 + $0x18] sm:$0xf]
        %v369 = vld [vmem:[%s334 + $0x1c] sm:$0xf]
        %v370 = vld [vmem:[%s334 + $0x20] sm:$0xf]
        %v371 = vld [vmem:[%s334 + $0x24] sm:$0xf]
        %v372 = vld [vmem:[%s334 + $0x28] sm:$0xf]
        %v373 = vld [vmem:[%s334 + $0x2c] sm:$0xf]
        %v374 = vld [vmem:[%s334 + $0x30] sm:$0xf]
        %v375 = vld [vmem:[%s334 + $0x34] sm:$0xf]
        %v376 = vld [vmem:[%s334 + $0x38] sm:$0xf]
        %v377 = vld [vmem:[%s334 + $0x3c] sm:$0xf]
        %s378 = scalar_lea.vmem %s357, 8
        %v379 = vld [vmem:[%s378] sm:$0xf]
        %v380 = vld [vmem:[%s378 + $0x4] sm:$0x3]
        %v381 = vld [vmem:[%s360] sm:$0x1]
        %v383 = vlaneseq
        %v384 = vshrl.u32 %v383, 7
        %v385 = vsub.s32 0, %v384
        %v386 = vrot.slane %v381, %v385
        %v404 = vunpack.c.l.b16 %v362
        %v405 = vunpack.c.l.b16 %v363
        %v406 = vunpack.c.l.b16 %v364
        %v407 = vunpack.c.l.b16 %v365
        %v408 = vunpack.c.l.b16 %v366
        %v409 = vunpack.c.l.b16 %v367
        %v410 = vunpack.c.l.b16 %v368
        %v411 = vunpack.c.l.b16 %v369
        %v412 = vunpack.c.l.b16 %v370
        %v413 = vunpack.c.l.b16 %v371
        %v414 = vunpack.c.l.b16 %v372
        %v415 = vunpack.c.l.b16 %v373
        %v416 = vunpack.c.l.b16 %v374
        %v417 = vunpack.c.l.b16 %v375
        %v418 = vunpack.c.l.b16 %v376
        %v419 = vunpack.c.l.b16 %v377
        %v420 = vpack.c.b16 %v405, %v404
        %v421 = vpack.c.b16 %v407, %v406
        %v422 = vpack.c.b16 %v409, %v408
        %v423 = vpack.c.b16 %v411, %v410
        %v424 = vpack.c.b16 %v413, %v412
        %v425 = vpack.c.b16 %v415, %v414
        %v426 = vpack.c.b16 %v417, %v416
        %v427 = vpack.c.b16 %v419, %v418
        %v430 = vunpack.c.l.b16 %v379
        %v431 = vunpack.c.l.b16 %v380
        %v432 = vpack.c.b16 %v431, %v430
        %vm433 = vcmask 97280
        %v435 = vsel %vm433, %v420, 0
        %v438 = vsel %vm433, %v421, 0
        %v441 = vsel %vm433, %v422, 0
        %v444 = vsel %vm433, %v423, 0
        %v447 = vsel %vm433, %v424, 0
        %v450 = vsel %vm433, %v425, 0
        %v453 = vsel %vm433, %v426, 0
        %v456 = vsel %vm433, %v427, 0
        %vm458 = vcmask 1045504
        %v460 = vsel %vm458, %v432, 0
        %462 = vmatprep.subr.bf16.mxu0 0
        %463 = vmatpush1.bf16.msra.mxu0 %v460
        %464 = vmatprep.subr.bf16.mxu0 0
        %465 = vmatpush1.bf16.msra.mxu0 0
        %466 = vmatprep.subr.bf16.mxu0 0
        %467 = vmatpush1.bf16.msra.mxu0 0
        %468 = vmatprep.subr.bf16.mxu0 0
        %469 = vmatpush1.bf16.msra.mxu0 0
        %470 = vmatprep.subr.bf16.mxu0 0
        %471 = vmatpush1.bf16.msra.mxu0 0
        %472 = vmatprep.subr.bf16.mxu0 0
        %473 = vmatpush1.bf16.msra.mxu0 0
        %474 = vmatprep.subr.bf16.mxu0 0
        %475 = vmatpush1.bf16.msra.mxu0 0
        %476 = vmatprep.subr.bf16.mxu0 0
        %477 = vmatpush1.bf16.msra.mxu0 0
        %478 = vmatprep.subr.bf16.mxu0 0
        %479 = vmatpush1.bf16.msra.mxu0 0
        %480 = vmatprep.subr.bf16.mxu0 0
        %481 = vmatpush1.bf16.msra.mxu0 0
        %482 = vmatprep.subr.bf16.mxu0 0
        %483 = vmatpush1.bf16.msra.mxu0 0
        %484 = vmatprep.subr.bf16.mxu0 0
        %485 = vmatpush1.bf16.msra.mxu0 0
        %486 = vmatprep.subr.bf16.mxu0 0
        %487 = vmatpush1.bf16.msra.mxu0 0
        %488 = vmatprep.subr.bf16.mxu0 0
        %489 = vmatpush1.bf16.msra.mxu0 0
        %490 = vmatprep.subr.bf16.mxu0 0
        %491 = vmatpush1.bf16.msra.mxu0 0
        %492 = vmatprep.subr.bf16.mxu0 0
        %493 = vmatpush1.bf16.msra.mxu0 0
        %494 = vmatprep.mubr.bf16.mxu0 0
        %495 = vmatmul.mubr.bf16.gmra.mrb[0].mxu0 %v435
        %v496 = vpop.f32.mrb[0].mxu0
        %v497 = vadd.f32 %v386, %v496
        %v498 = vpop.f32.mrb[0].mxu0
        %v499 = vpop.f32.mrb[0].mxu0
        %v500 = vadd.f32 %v386, %v499
        %v501 = vpop.f32.mrb[0].mxu0
        %502 = vmatprep.mubr.bf16.mxu0 0
        %503 = vmatmul.mubr.bf16.gmra.mrb[0].mxu0 %v438
        %v504 = vpop.f32.mrb[0].mxu0
        %v505 = vadd.f32 %v386, %v504
        %v506 = vpop.f32.mrb[0].mxu0
        %v507 = vpop.f32.mrb[0].mxu0
        %v508 = vadd.f32 %v386, %v507
        %v509 = vpop.f32.mrb[0].mxu0
        %510 = vmatprep.mubr.bf16.mxu0 0
        %511 = vmatmul.mubr.bf16.gmra.mrb[0].mxu0 %v441
        %v512 = vpop.f32.mrb[0].mxu0
        %v513 = vadd.f32 %v386, %v512
        %v514 = vpop.f32.mrb[0].mxu0
        %v515 = vpop.f32.mrb[0].mxu0
        %v516 = vadd.f32 %v386, %v515
        %v517 = vpop.f32.mrb[0].mxu0
        %518 = vmatprep.mubr.bf16.mxu0 0
        %519 = vmatmul.mubr.bf16.gmra.mrb[0].mxu0 %v444
        %v520 = vpop.f32.mrb[0].mxu0
        %v521 = vadd.f32 %v386, %v520
        %v522 = vpop.f32.mrb[0].mxu0
        %v523 = vpop.f32.mrb[0].mxu0
        %v524 = vadd.f32 %v386, %v523
        %v525 = vpop.f32.mrb[0].mxu0
        %526 = vmatprep.mubr.bf16.mxu0 0
        %527 = vmatmul.mubr.bf16.gmra.mrb[0].mxu0 %v447
        %v528 = vpop.f32.mrb[0].mxu0
        %v529 = vadd.f32 %v386, %v528
        %v530 = vpop.f32.mrb[0].mxu0
        %v531 = vpop.f32.mrb[0].mxu0
        %v532 = vadd.f32 %v386, %v531
        %v533 = vpop.f32.mrb[0].mxu0
        %534 = vmatprep.mubr.bf16.mxu0 0
        %535 = vmatmul.mubr.bf16.gmra.mrb[0].mxu0 %v450
        %v536 = vpop.f32.mrb[0].mxu0
        %v537 = vadd.f32 %v386, %v536
        %v538 = vpop.f32.mrb[0].mxu0
        %v539 = vpop.f32.mrb[0].mxu0
        %v540 = vadd.f32 %v386, %v539
        %v541 = vpop.f32.mrb[0].mxu0
        %542 = vmatprep.mubr.bf16.mxu0 0
        %543 = vmatmul.mubr.bf16.gmra.mrb[0].mxu0 %v453
        %v544 = vpop.f32.mrb[0].mxu0
        %v545 = vadd.f32 %v386, %v544
        %v546 = vpop.f32.mrb[0].mxu0
        %v547 = vpop.f32.mrb[0].mxu0
        %v548 = vadd.f32 %v386, %v547
        %v549 = vpop.f32.mrb[0].mxu0
        %550 = vmatprep.mubr.bf16.mxu0 0
        %551 = vmatmul.mubr.bf16.gmra.mrb[0].mxu0 %v456
        %v552 = vpop.f32.mrb[0].mxu0
        %v553 = vadd.f32 %v386, %v552
        %v554 = vpop.f32.mrb[0].mxu0
        %v555 = vpop.f32.mrb[0].mxu0
        %v556 = vadd.f32 %v386, %v555
        %v557 = vpop.f32.mrb[0].mxu0
        %558 = vdwg.mxu0
        %559 = vst [vmem:[%s325] sm:$0xff] %v497
        %560 = vst [vmem:[%s325 + $0x8] sm:$0xff] %v500
        %561 = vst [vmem:[%s325 + $0x10] sm:$0xff] %v505
        %562 = vst [vmem:[%s325 + $0x18] sm:$0xff] %v508
        %563 = vst [vmem:[%s325 + $0x20] sm:$0xff] %v513
        %564 = vst [vmem:[%s325 + $0x28] sm:$0xff] %v516
        %565 = vst [vmem:[%s325 + $0x30] sm:$0xff] %v521
        %566 = vst [vmem:[%s325 + $0x38] sm:$0xff] %v524
        %567 = vst [vmem:[%s325 + $0x40] sm:$0xff] %v529
        %568 = vst [vmem:[%s325 + $0x48] sm:$0xff] %v532
        %569 = vst [vmem:[%s325 + $0x50] sm:$0xff] %v537
        %570 = vst [vmem:[%s325 + $0x58] sm:$0xff] %v540
        %571 = vst [vmem:[%s325 + $0x60] sm:$0xff] %v545
        %572 = vst [vmem:[%s325 + $0x68] sm:$0xff] %v548
        %573 = vst [vmem:[%s325 + $0x70] sm:$0xff] %v553
        %574 = vst [vmem:[%s325 + $0x78] sm:$0xff] %v556
        %v575 = vld [vmem:[%s325] sm:$0xff]
        %v576 = vld [vmem:[%s325 + $0x8] sm:$0xff]
        %v577 = vld [vmem:[%s344] sm:$0xf]
        %v578 = vld [vmem:[%s344 + $0x4] sm:$0xf]
        %v579 = vld [vmem:[%s357] sm:$0xf]
        %v580 = vld [vmem:[%s357 + $0x4] sm:$0x3]
        %v583 = vunpack.c.l.b16 %v577
        %v584 = vunpack.c.l.b16 %v578
        %v585 = vpack.c.b16 %v584, %v583
        %v588 = vunpack.c.l.b16 %v579
        %v589 = vunpack.c.l.b16 %v580
        %v590 = vpack.c.b16 %v589, %v588
        %v592 = vsel %vm433, %v585, 0
        %v595 = vsel %vm458, %v590, 0
        %597 = vmatprep.subr.bf16.mxu0 0
        %598 = vmatpush1.bf16.msra.mxu0 %v595
        %599 = vmatprep.subr.bf16.mxu0 0
        %600 = vmatpush1.bf16.msra.mxu0 0
        %601 = vmatprep.subr.bf16.mxu0 0
        %602 = vmatpush1.bf16.msra.mxu0 0
        %603 = vmatprep.subr.bf16.mxu0 0
        %604 = vmatpush1.bf16.msra.mxu0 0
        %605 = vmatprep.subr.bf16.mxu0 0
        %606 = vmatpush1.bf16.msra.mxu0 0
        %607 = vmatprep.subr.bf16.mxu0 0
        %608 = vmatpush1.bf16.msra.mxu0 0
        %609 = vmatprep.subr.bf16.mxu0 0
        %610 = vmatpush1.bf16.msra.mxu0 0
        %611 = vmatprep.subr.bf16.mxu0 0
        %612 = vmatpush1.bf16.msra.mxu0 0
        %613 = vmatprep.subr.bf16.mxu0 0
        %614 = vmatpush1.bf16.msra.mxu0 0
        %615 = vmatprep.subr.bf16.mxu0 0
        %616 = vmatpush1.bf16.msra.mxu0 0
        %617 = vmatprep.subr.bf16.mxu0 0
        %618 = vmatpush1.bf16.msra.mxu0 0
        %619 = vmatprep.subr.bf16.mxu0 0
        %620 = vmatpush1.bf16.msra.mxu0 0
        %621 = vmatprep.subr.bf16.mxu0 0
        %622 = vmatpush1.bf16.msra.mxu0 0
        %623 = vmatprep.subr.bf16.mxu0 0
        %624 = vmatpush1.bf16.msra.mxu0 0
        %625 = vmatprep.subr.bf16.mxu0 0
        %626 = vmatpush1.bf16.msra.mxu0 0
        %627 = vmatprep.subr.bf16.mxu0 0
        %628 = vmatpush1.bf16.msra.mxu0 0
        %629 = vmatprep.mubr.bf16.mxu0 0
        %630 = vmatmul.mubr.bf16.gmra.mrb[0].mxu0 %v592
        %v631 = vpop.f32.mrb[0].mxu0
        %v632 = vadd.f32 0.0, %v631
        %v633 = vpop.f32.mrb[0].mxu0
        %v634 = vpop.f32.mrb[0].mxu0
        %v635 = vadd.f32 0.0, %v634
        %v636 = vpop.f32.mrb[0].mxu0
        %637 = vdwg.mxu0
        %v638 = vadd.f32 %v575, %v632
        %v639 = vadd.f32 %v576, %v635
        %640 = vst [vmem:[%s325] sm:$0xff] %v638
        %641 = vst [vmem:[%s325 + $0x8] sm:$0xff] %v639
        %v642 = vld [vmem:[%s325 + $0x10] sm:$0xff]
        %v643 = vld [vmem:[%s325 + $0x18] sm:$0xff]
        %v644 = vld [vmem:[%s325 + $0x20] sm:$0xff]
        %v645 = vld [vmem:[%s325 + $0x28] sm:$0xff]
        %v646 = vld [vmem:[%s325 + $0x30] sm:$0xff]
        %v647 = vld [vmem:[%s325 + $0x38] sm:$0xff]
        %v648 = vld [vmem:[%s325 + $0x40] sm:$0xff]
        %v649 = vld [vmem:[%s325 + $0x48] sm:$0xff]
        %v650 = vld [vmem:[%s325 + $0x50] sm:$0xff]
        %v651 = vld [vmem:[%s325 + $0x58] sm:$0xff]
        %v652 = vld [vmem:[%s325 + $0x60] sm:$0xff]
        %v653 = vld [vmem:[%s325 + $0x68] sm:$0xff]
        %v654 = vld [vmem:[%s325 + $0x70] sm:$0xff]
        %v655 = vld [vmem:[%s325 + $0x78] sm:$0xff]
        %v656 = vld [vmem:[%s334] sm:$0xf]
        %v657 = vld [vmem:[%s334 + $0x4] sm:$0xf]
        %v658 = vld [vmem:[%s334 + $0x8] sm:$0xf]
        %v659 = vld [vmem:[%s334 + $0xc] sm:$0xf]
        %v660 = vld [vmem:[%s334 + $0x10] sm:$0xf]
        %v661 = vld [vmem:[%s334 + $0x14] sm:$0xf]
        %v662 = vld [vmem:[%s334 + $0x18] sm:$0xf]
        %v663 = vld [vmem:[%s334 + $0x1c] sm:$0xf]
        %v664 = vld [vmem:[%s334 + $0x20] sm:$0xf]
        %v665 = vld [vmem:[%s334 + $0x24] sm:$0xf]
        %v666 = vld [vmem:[%s334 + $0x28] sm:$0xf]
        %v667 = vld [vmem:[%s334 + $0x2c] sm:$0xf]
        %v668 = vld [vmem:[%s334 + $0x30] sm:$0xf]
        %v669 = vld [vmem:[%s334 + $0x34] sm:$0xf]
        %v670 = vld [vmem:[%s357] sm:$0xf]
        %v671 = vld [vmem:[%s357 + $0x4] sm:$0x3]
        %v686 = vunpack.c.l.b16 %v656
        %v687 = vunpack.c.l.b16 %v657
        %v688 = vunpack.c.l.b16 %v658
        %v689 = vunpack.c.l.b16 %v659
        %v690 = vunpack.c.l.b16 %v660
        %v691 = vunpack.c.l.b16 %v661
        %v692 = vunpack.c.l.b16 %v662
        %v693 = vunpack.c.l.b16 %v663
        %v694 = vunpack.c.l.b16 %v664
        %v695 = vunpack.c.l.b16 %v665
        %v696 = vunpack.c.l.b16 %v666
        %v697 = vunpack.c.l.b16 %v667
        %v698 = vunpack.c.l.b16 %v668
        %v699 = vunpack.c.l.b16 %v669
        %v700 = vpack.c.b16 %v687, %v686
        %v701 = vpack.c.b16 %v689, %v688
        %v702 = vpack.c.b16 %v691, %v690
        %v703 = vpack.c.b16 %v693, %v692
        %v704 = vpack.c.b16 %v695, %v694
        %v705 = vpack.c.b16 %v697, %v696
        %v706 = vpack.c.b16 %v699, %v698
        %v709 = vunpack.c.l.b16 %v670
        %v710 = vunpack.c.l.b16 %v671
        %v711 = vpack.c.b16 %v710, %v709
        %v713 = vsel %vm433, %v700, 0
        %v716 = vsel %vm433, %v701, 0
        %v719 = vsel %vm433, %v702, 0
        %v722 = vsel %vm433, %v703, 0
        %v725 = vsel %vm433, %v704, 0
        %v728 = vsel %vm433, %v705, 0
        %v731 = vsel %vm433, %v706, 0
        %v734 = vsel %vm458, %v711, 0
        %736 = vmatprep.subr.bf16.mxu0 0
        %737 = vmatpush1.bf16.msra.mxu0 %v734
        %738 = vmatprep.subr.bf16.mxu0 0
        %739 = vmatpush1.bf16.msra.mxu0 0
        %740 = vmatprep.subr.bf16.mxu0 0
        %741 = vmatpush1.bf16.msra.mxu0 0
        %742 = vmatprep.subr.bf16.mxu0 0
        %743 = vmatpush1.bf16.msra.mxu0 0
        %744 = vmatprep.subr.bf16.mxu0 0
        %745 = vmatpush1.bf16.msra.mxu0 0
        %746 = vmatprep.subr.bf16.mxu0 0
        %747 = vmatpush1.bf16.msra.mxu0 0
        %748 = vmatprep.subr.bf16.mxu0 0
        %749 = vmatpush1.bf16.msra.mxu0 0
        %750 = vmatprep.subr.bf16.mxu0 0
        %751 = vmatpush1.bf16.msra.mxu0 0
        %752 = vmatprep.subr.bf16.mxu0 0
        %753 = vmatpush1.bf16.msra.mxu0 0
        %754 = vmatprep.subr.bf16.mxu0 0
        %755 = vmatpush1.bf16.msra.mxu0 0
        %756 = vmatprep.subr.bf16.mxu0 0
        %757 = vmatpush1.bf16.msra.mxu0 0
        %758 = vmatprep.subr.bf16.mxu0 0
        %759 = vmatpush1.bf16.msra.mxu0 0
        %760 = vmatprep.subr.bf16.mxu0 0
        %761 = vmatpush1.bf16.msra.mxu0 0
        %762 = vmatprep.subr.bf16.mxu0 0
        %763 = vmatpush1.bf16.msra.mxu0 0
        %764 = vmatprep.subr.bf16.mxu0 0
        %765 = vmatpush1.bf16.msra.mxu0 0
        %766 = vmatprep.subr.bf16.mxu0 0
        %767 = vmatpush1.bf16.msra.mxu0 0
        %768 = vmatprep.mubr.bf16.mxu0 0
        %769 = vmatmul.mubr.bf16.gmra.mrb[0].mxu0 %v713
        %v770 = vpop.f32.mrb[0].mxu0
        %v771 = vadd.f32 0.0, %v770
        %v772 = vpop.f32.mrb[0].mxu0
        %v773 = vpop.f32.mrb[0].mxu0
        %v774 = vadd.f32 0.0, %v773
        %v775 = vpop.f32.mrb[0].mxu0
        %776 = vmatprep.mubr.bf16.mxu0 0
        %777 = vmatmul.mubr.bf16.gmra.mrb[0].mxu0 %v716
        %v778 = vpop.f32.mrb[0].mxu0
        %v779 = vadd.f32 0.0, %v778
        %v780 = vpop.f32.mrb[0].mxu0
        %v781 = vpop.f32.mrb[0].mxu0
        %v782 = vadd.f32 0.0, %v781
        %v783 = vpop.f32.mrb[0].mxu0
        %784 = vmatprep.mubr.bf16.mxu0 0
        %785 = vmatmul.mubr.bf16.gmra.mrb[0].mxu0 %v719
        %v786 = vpop.f32.mrb[0].mxu0
        %v787 = vadd.f32 0.0, %v786
        %v788 = vpop.f32.mrb[0].mxu0
        %v789 = vpop.f32.mrb[0].mxu0
        %v790 = vadd.f32 0.0, %v789
        %v791 = vpop.f32.mrb[0].mxu0
        %792 = vmatprep.mubr.bf16.mxu0 0
        %793 = vmatmul.mubr.bf16.gmra.mrb[0].mxu0 %v722
        %v794 = vpop.f32.mrb[0].mxu0
        %v795 = vadd.f32 0.0, %v794
        %v796 = vpop.f32.mrb[0].mxu0
        %v797 = vpop.f32.mrb[0].mxu0
        %v798 = vadd.f32 0.0, %v797
        %v799 = vpop.f32.mrb[0].mxu0
        %800 = vmatprep.mubr.bf16.mxu0 0
        %801 = vmatmul.mubr.bf16.gmra.mrb[0].mxu0 %v725
        %v802 = vpop.f32.mrb[0].mxu0
        %v803 = vadd.f32 0.0, %v802
        %v804 = vpop.f32.mrb[0].mxu0
        %v805 = vpop.f32.mrb[0].mxu0
        %v806 = vadd.f32 0.0, %v805
        %v807 = vpop.f32.mrb[0].mxu0
        %808 = vmatprep.mubr.bf16.mxu0 0
        %809 = vmatmul.mubr.bf16.gmra.mrb[0].mxu0 %v728
        %v810 = vpop.f32.mrb[0].mxu0
        %v811 = vadd.f32 0.0, %v810
        %v812 = vpop.f32.mrb[0].mxu0
        %v813 = vpop.f32.mrb[0].mxu0
        %v814 = vadd.f32 0.0, %v813
        %v815 = vpop.f32.mrb[0].mxu0
        %816 = vmatprep.mubr.bf16.mxu0 0
        %817 = vmatmul.mubr.bf16.gmra.mrb[0].mxu0 %v731
        %v818 = vpop.f32.mrb[0].mxu0
        %v819 = vadd.f32 0.0, %v818
        %v820 = vpop.f32.mrb[0].mxu0
        %v821 = vpop.f32.mrb[0].mxu0
        %v822 = vadd.f32 0.0, %v821
        %v823 = vpop.f32.mrb[0].mxu0
        %824 = vdwg.mxu0
        %v825 = vadd.f32 %v642, %v771
        %v826 = vadd.f32 %v643, %v774
        %v827 = vadd.f32 %v644, %v779
        %v828 = vadd.f32 %v645, %v782
        %v829 = vadd.f32 %v646, %v787
        %v830 = vadd.f32 %v647, %v790
        %v831 = vadd.f32 %v648, %v795
        %v832 = vadd.f32 %v649, %v798
        %v833 = vadd.f32 %v650, %v803
        %v834 = vadd.f32 %v651, %v806
        %v835 = vadd.f32 %v652, %v811
        %v836 = vadd.f32 %v653, %v814
        %v837 = vadd.f32 %v654, %v819
        %v838 = vadd.f32 %v655, %v822
        %839 = vst [vmem:[%s325 + $0x10] sm:$0xff] %v825
        %840 = vst [vmem:[%s325 + $0x18] sm:$0xff] %v826
        %841 = vst [vmem:[%s325 + $0x20] sm:$0xff] %v827
        %842 = vst [vmem:[%s325 + $0x28] sm:$0xff] %v828
        %843 = vst [vmem:[%s325 + $0x30] sm:$0xff] %v829
        %844 = vst [vmem:[%s325 + $0x38] sm:$0xff] %v830
        %845 = vst [vmem:[%s325 + $0x40] sm:$0xff] %v831
        %846 = vst [vmem:[%s325 + $0x48] sm:$0xff] %v832
        %847 = vst [vmem:[%s325 + $0x50] sm:$0xff] %v833
        %848 = vst [vmem:[%s325 + $0x58] sm:$0xff] %v834
        %849 = vst [vmem:[%s325 + $0x60] sm:$0xff] %v835
        %850 = vst [vmem:[%s325 + $0x68] sm:$0xff] %v836
        %851 = vst [vmem:[%s325 + $0x70] sm:$0xff] %v837
        %852 = vst [vmem:[%s325 + $0x78] sm:$0xff] %v838
        %v853 = vld [vmem:[%s325] sm:$0xff]
        %v854 = vld [vmem:[%s325 + $0x8] sm:$0xff]
        %v855 = vld [vmem:[%s325 + $0x10] sm:$0xff]
        %v856 = vld [vmem:[%s325 + $0x18] sm:$0xff]
        %v857 = vld [vmem:[%s325 + $0x20] sm:$0xff]
        %v858 = vld [vmem:[%s325 + $0x28] sm:$0xff]
        %v859 = vld [vmem:[%s325 + $0x30] sm:$0xff]
        %v860 = vld [vmem:[%s325 + $0x38] sm:$0xff]
        %v861 = vld [vmem:[%s325 + $0x40] sm:$0xff]
        %v862 = vld [vmem:[%s325 + $0x48] sm:$0xff]
        %v863 = vld [vmem:[%s325 + $0x50] sm:$0xff]
        %v864 = vld [vmem:[%s325 + $0x58] sm:$0xff]
        %v865 = vld [vmem:[%s325 + $0x60] sm:$0xff]
        %v866 = vld [vmem:[%s325 + $0x68] sm:$0xff]
        %v867 = vld [vmem:[%s334 + $0x8] sm:$0xf]
        %v868 = vld [vmem:[%s334 + $0xc] sm:$0xf]
        %v869 = vld [vmem:[%s334 + $0x10] sm:$0xf]
        %v870 = vld [vmem:[%s334 + $0x14] sm:$0xf]
        %v871 = vld [vmem:[%s334 + $0x18] sm:$0xf]
        %v872 = vld [vmem:[%s334 + $0x1c] sm:$0xf]
        %v873 = vld [vmem:[%s334 + $0x20] sm:$0xf]
        %v874 = vld [vmem:[%s334 + $0x24] sm:$0xf]
        %v875 = vld [vmem:[%s334 + $0x28] sm:$0xf]
        %v876 = vld [vmem:[%s334 + $0x2c] sm:$0xf]
        %v877 = vld [vmem:[%s334 + $0x30] sm:$0xf]
        %v878 = vld [vmem:[%s334 + $0x34] sm:$0xf]
        %v879 = vld [vmem:[%s334 + $0x38] sm:$0xf]
        %v880 = vld [vmem:[%s334 + $0x3c] sm:$0xf]
        %s881 = scalar_lea.vmem %s357, 16
        %v882 = vld [vmem:[%s881] sm:$0xf]
        %v883 = vld [vmem:[%s881 + $0x4] sm:$0x3]
        %v898 = vunpack.c.l.b16 %v867
        %v899 = vunpack.c.l.b16 %v868
        %v900 = vunpack.c.l.b16 %v869
        %v901 = vunpack.c.l.b16 %v870
        %v902 = vunpack.c.l.b16 %v871
        %v903 = vunpack.c.l.b16 %v872
        %v904 = vunpack.c.l.b16 %v873
        %v905 = vunpack.c.l.b16 %v874
        %v906 = vunpack.c.l.b16 %v875
        %v907 = vunpack.c.l.b16 %v876
        %v908 = vunpack.c.l.b16 %v877
        %v909 = vunpack.c.l.b16 %v878
        %v910 = vunpack.c.l.b16 %v879
        %v911 = vunpack.c.l.b16 %v880
        %v912 = vpack.c.b16 %v899, %v898
        %v913 = vpack.c.b16 %v901, %v900
        %v914 = vpack.c.b16 %v903, %v902
        %v915 = vpack.c.b16 %v905, %v904
        %v916 = vpack.c.b16 %v907, %v906
        %v917 = vpack.c.b16 %v909, %v908
        %v918 = vpack.c.b16 %v911, %v910
        %v921 = vunpack.c.l.b16 %v882
        %v922 = vunpack.c.l.b16 %v883
        %v923 = vpack.c.b16 %v922, %v921
        %v925 = vsel %vm433, %v912, 0
        %v928 = vsel %vm433, %v913, 0
        %v931 = vsel %vm433, %v914, 0
        %v934 = vsel %vm433, %v915, 0
        %v937 = vsel %vm433, %v916, 0
        %v940 = vsel %vm433, %v917, 0
        %v943 = vsel %vm433, %v918, 0
        %v946 = vsel %vm458, %v923, 0
        %948 = vmatprep.subr.bf16.mxu0 0
        %949 = vmatpush1.bf16.msra.mxu0 %v946
        %950 = vmatprep.subr.bf16.mxu0 0
        %951 = vmatpush1.bf16.msra.mxu0 0
        %952 = vmatprep.subr.bf16.mxu0 0
        %953 = vmatpush1.bf16.msra.mxu0 0
        %954 = vmatprep.subr.bf16.mxu0 0
        %955 = vmatpush1.bf16.msra.mxu0 0
        %956 = vmatprep.subr.bf16.mxu0 0
        %957 = vmatpush1.bf16.msra.mxu0 0
        %958 = vmatprep.subr.bf16.mxu0 0
        %959 = vmatpush1.bf16.msra.mxu0 0
        %960 = vmatprep.subr.bf16.mxu0 0
        %961 = vmatpush1.bf16.msra.mxu0 0
        %962 = vmatprep.subr.bf16.mxu0 0
        %963 = vmatpush1.bf16.msra.mxu0 0
        %964 = vmatprep.subr.bf16.mxu0 0
        %965 = vmatpush1.bf16.msra.mxu0 0
        %966 = vmatprep.subr.bf16.mxu0 0
        %967 = vmatpush1.bf16.msra.mxu0 0
        %968 = vmatprep.subr.bf16.mxu0 0
        %969 = vmatpush1.bf16.msra.mxu0 0
        %970 = vmatprep.subr.bf16.mxu0 0
        %971 = vmatpush1.bf16.msra.mxu0 0
        %972 = vmatprep.subr.bf16.mxu0 0
        %973 = vmatpush1.bf16.msra.mxu0 0
        %974 = vmatprep.subr.bf16.mxu0 0
        %975 = vmatpush1.bf16.msra.mxu0 0
        %976 = vmatprep.subr.bf16.mxu0 0
        %977 = vmatpush1.bf16.msra.mxu0 0
        %978 = vmatprep.subr.bf16.mxu0 0
        %979 = vmatpush1.bf16.msra.mxu0 0
        %980 = vmatprep.mubr.bf16.mxu0 0
        %981 = vmatmul.mubr.bf16.gmra.mrb[0].mxu0 %v925
        %v982 = vpop.f32.mrb[0].mxu0
        %v983 = vadd.f32 0.0, %v982
        %v984 = vpop.f32.mrb[0].mxu0
        %v985 = vpop.f32.mrb[0].mxu0
        %v986 = vadd.f32 0.0, %v985
        %v987 = vpop.f32.mrb[0].mxu0
        %988 = vmatprep.mubr.bf16.mxu0 0
        %989 = vmatmul.mubr.bf16.gmra.mrb[0].mxu0 %v928
        %v990 = vpop.f32.mrb[0].mxu0
        %v991 = vadd.f32 0.0, %v990
        %v992 = vpop.f32.mrb[0].mxu0
        %v993 = vpop.f32.mrb[0].mxu0
        %v994 = vadd.f32 0.0, %v993
        %v995 = vpop.f32.mrb[0].mxu0
        %996 = vmatprep.mubr.bf16.mxu0 0
        %997 = vmatmul.mubr.bf16.gmra.mrb[0].mxu0 %v931
        %v998 = vpop.f32.mrb[0].mxu0
        %v999 = vadd.f32 0.0, %v998
        %v1000 = vpop.f32.mrb[0].mxu0
        %v1001 = vpop.f32.mrb[0].mxu0
        %v1002 = vadd.f32 0.0, %v1001
        %v1003 = vpop.f32.mrb[0].mxu0
        %1004 = vmatprep.mubr.bf16.mxu0 0
        %1005 = vmatmul.mubr.bf16.gmra.mrb[0].mxu0 %v934
        %v1006 = vpop.f32.mrb[0].mxu0
        %v1007 = vadd.f32 0.0, %v1006
        %v1008 = vpop.f32.mrb[0].mxu0
        %v1009 = vpop.f32.mrb[0].mxu0
        %v1010 = vadd.f32 0.0, %v1009
        %v1011 = vpop.f32.mrb[0].mxu0
        %1012 = vmatprep.mubr.bf16.mxu0 0
        %1013 = vmatmul.mubr.bf16.gmra.mrb[0].mxu0 %v937
        %v1014 = vpop.f32.mrb[0].mxu0
        %v1015 = vadd.f32 0.0, %v1014
        %v1016 = vpop.f32.mrb[0].mxu0
        %v1017 = vpop.f32.mrb[0].mxu0
        %v1018 = vadd.f32 0.0, %v1017
        %v1019 = vpop.f32.mrb[0].mxu0
        %1020 = vmatprep.mubr.bf16.mxu0 0
        %1021 = vmatmul.mubr.bf16.gmra.mrb[0].mxu0 %v940
        %v1022 = vpop.f32.mrb[0].mxu0
        %v1023 = vadd.f32 0.0, %v1022
        %v1024 = vpop.f32.mrb[0].mxu0
        %v1025 = vpop.f32.mrb[0].mxu0
        %v1026 = vadd.f32 0.0, %v1025
        %v1027 = vpop.f32.mrb[0].mxu0
        %1028 = vmatprep.mubr.bf16.mxu0 0
        %1029 = vmatmul.mubr.bf16.gmra.mrb[0].mxu0 %v943
        %v1030 = vpop.f32.mrb[0].mxu0
        %v1031 = vadd.f32 0.0, %v1030
        %v1032 = vpop.f32.mrb[0].mxu0
        %v1033 = vpop.f32.mrb[0].mxu0
        %v1034 = vadd.f32 0.0, %v1033
        %v1035 = vpop.f32.mrb[0].mxu0
        %1036 = vdwg.mxu0
        %v1037 = vadd.f32 %v853, %v983
        %v1038 = vadd.f32 %v854, %v986
        %v1039 = vadd.f32 %v855, %v991
        %v1040 = vadd.f32 %v856, %v994
        %v1041 = vadd.f32 %v857, %v999
        %v1042 = vadd.f32 %v858, %v1002
        %v1043 = vadd.f32 %v859, %v1007
        %v1044 = vadd.f32 %v860, %v1010
        %v1045 = vadd.f32 %v861, %v1015
        %v1046 = vadd.f32 %v862, %v1018
        %v1047 = vadd.f32 %v863, %v1023
        %v1048 = vadd.f32 %v864, %v1026
        %v1049 = vadd.f32 %v865, %v1031
        %v1050 = vadd.f32 %v866, %v1034
        %1051 = vst [vmem:[%s325] sm:$0xff] %v1037
        %1052 = vst [vmem:[%s325 + $0x8] sm:$0xff] %v1038
        %1053 = vst [vmem:[%s325 + $0x10] sm:$0xff] %v1039
        %1054 = vst [vmem:[%s325 + $0x18] sm:$0xff] %v1040
        %1055 = vst [vmem:[%s325 + $0x20] sm:$0xff] %v1041
        %1056 = vst [vmem:[%s325 + $0x28] sm:$0xff] %v1042
        %1057 = vst [vmem:[%s325 + $0x30] sm:$0xff] %v1043
        %1058 = vst [vmem:[%s325 + $0x38] sm:$0xff] %v1044
        %1059 = vst [vmem:[%s325 + $0x40] sm:$0xff] %v1045
        %1060 = vst [vmem:[%s325 + $0x48] sm:$0xff] %v1046
        %1061 = vst [vmem:[%s325 + $0x50] sm:$0xff] %v1047
        %1062 = vst [vmem:[%s325 + $0x58] sm:$0xff] %v1048
        %1063 = vst [vmem:[%s325 + $0x60] sm:$0xff] %v1049
        %1064 = vst [vmem:[%s325 + $0x68] sm:$0xff] %v1050
        %v1065 = vld [vmem:[%s325 + $0x70] sm:$0xff]
        %v1066 = vld [vmem:[%s325 + $0x78] sm:$0xff]
        %v1067 = vld [vmem:[%s353] sm:$0xf]
        %v1068 = vld [vmem:[%s353 + $0x4] sm:$0xf]
        %v1069 = vld [vmem:[%s881] sm:$0xf]
        %v1070 = vld [vmem:[%s881 + $0x4] sm:$0x3]
        %v1073 = vunpack.c.l.b16 %v1067
        %v1074 = vunpack.c.l.b16 %v1068
        %v1075 = vpack.c.b16 %v1074, %v1073
        %v1078 = vunpack.c.l.b16 %v1069
        %v1079 = vunpack.c.l.b16 %v1070
        %v1080 = vpack.c.b16 %v1079, %v1078
        %v1082 = vsel %vm433, %v1075, 0
        %v1085 = vsel %vm458, %v1080, 0
        %1087 = vmatprep.subr.bf16.mxu0 0
        %1088 = vmatpush1.bf16.msra.mxu0 %v1085
        %1089 = vmatprep.subr.bf16.mxu0 0
        %1090 = vmatpush1.bf16.msra.mxu0 0
        %1091 = vmatprep.subr.bf16.mxu0 0
        %1092 = vmatpush1.bf16.msra.mxu0 0
        %1093 = vmatprep.subr.bf16.mxu0 0
        %1094 = vmatpush1.bf16.msra.mxu0 0
        %1095 = vmatprep.subr.bf16.mxu0 0
        %1096 = vmatpush1.bf16.msra.mxu0 0
        %1097 = vmatprep.subr.bf16.mxu0 0
        %1098 = vmatpush1.bf16.msra.mxu0 0
        %1099 = vmatprep.subr.bf16.mxu0 0
        %1100 = vmatpush1.bf16.msra.mxu0 0
        %1101 = vmatprep.subr.bf16.mxu0 0
        %1102 = vmatpush1.bf16.msra.mxu0 0
        %1103 = vmatprep.subr.bf16.mxu0 0
        %1104 = vmatpush1.bf16.msra.mxu0 0
        %1105 = vmatprep.subr.bf16.mxu0 0
        %1106 = vmatpush1.bf16.msra.mxu0 0
        %1107 = vmatprep.subr.bf16.mxu0 0
        %1108 = vmatpush1.bf16.msra.mxu0 0
        %1109 = vmatprep.subr.bf16.mxu0 0
        %1110 = vmatpush1.bf16.msra.mxu0 0
        %1111 = vmatprep.subr.bf16.mxu0 0
        %1112 = vmatpush1.bf16.msra.mxu0 0
        %1113 = vmatprep.subr.bf16.mxu0 0
        %1114 = vmatpush1.bf16.msra.mxu0 0
        %1115 = vmatprep.subr.bf16.mxu0 0
        %1116 = vmatpush1.bf16.msra.mxu0 0
        %1117 = vmatprep.subr.bf16.mxu0 0
        %1118 = vmatpush1.bf16.msra.mxu0 0
        %1119 = vmatprep.mubr.bf16.mxu0 0
        %1120 = vmatmul.mubr.bf16.gmra.mrb[0].mxu0 %v1082
        %v1121 = vpop.f32.mrb[0].mxu0
        %v1122 = vadd.f32 0.0, %v1121
        %v1123 = vpop.f32.mrb[0].mxu0
        %v1124 = vpop.f32.mrb[0].mxu0
        %v1125 = vadd.f32 0.0, %v1124
        %v1126 = vpop.f32.mrb[0].mxu0
        %1127 = vdwg.mxu0
        %v1128 = vadd.f32 %v1065, %v1122
        %v1129 = vadd.f32 %v1066, %v1125
        %1130 = vst [vmem:[%s325 + $0x70] sm:$0xff] %v1128
        %1131 = vst [vmem:[%s325 + $0x78] sm:$0xff] %v1129
        %s1132 = sand.u32 %s186, 1
        %s1133 = scalar_lea.sflag [#allocation3], %s1132
        %s1134 = sand.u32 %s186, 1
        %s1135 = smul.addr %s1134, 128
        %s1136 = scalar_lea.vmem [#allocation2], %s1135
        // Predicated region
        $region41: #{tpu_custom_call.1} parent=39 // pred_check
          %p1137 = pneg %p196
        $region42: #{tpu_custom_call.1} parent=39 // pred_check_branch
          %1139 = sbr.rel (%p1137) target = $region44
        $region43: #{tpu_custom_call.1} parent=39 // pred_region
          %s1141 = ssub.s32 2048, 2048
          %1142 = vsyncadd %s1133, %s1141
          %s1143 = smul.addr %s26, 16
          %s1144 = sadd.s32 %s24, %s1143
          %s1145 = smul.addr %s25, 32
          %s1146 = sadd.s32 %s1144, %s1145
          %s1147 = smul.addr %s1146, 128
          %s1148 = scalar_lea.hbm %s5, %s1147
          %s1149 = sshll.u32 %s1136, 4
          %s1150 = int_to_ptr.vmem [resolvable:$true] %s1149
          %1155 = dma.vmem_to_hbm [thread:$0]  %s1150, 2048, %s1148, %s1133, 128, 128, 8
        $region44: #{tpu_custom_call.1} parent=39 // pred_fallthru
          _
      $region40: #{tpu_custom_call.1} parent=5 // pred_fallthru
        _
      %p1156 = scmp.le.s32.totalorder 2, %s14
      // Predicated region
      $region45: #{tpu_custom_call.1} parent=5 // pred_check
        %p1157 = pneg %p1156
      $region46: #{tpu_custom_call.1} parent=5 // pred_check_branch
        %1159 = sbr.rel (%p1157) target = $region48
      $region47: #{tpu_custom_call.1} parent=5 // pred_region
        %s1160 = ssub.s32 %s14, 2
        // Predicated region
        $region49: #{tpu_custom_call.1} parent=47 // pred_check
          %p1161 = pneg %p202
        $region50: #{tpu_custom_call.1} parent=47 // pred_check_branch
          %1163 = sbr.rel (%p1161) target = $region52
        $region51: #{tpu_custom_call.1} parent=47 // pred_region
          %s1164 = sand.u32 %s187, 1
          %s1165 = scalar_lea.sflag [#allocation3], %s1164
          %s1166 = sand.u32 %s187, 1
          %s1167 = smul.addr %s1166, 128
          %s1168 = scalar_lea.vmem [#allocation2], %s1167
          %1169 = dma.done %s1165, 2048
        $region52: #{tpu_custom_call.1} parent=47 // pred_fallthru
          _
      $region48: #{tpu_custom_call.1} parent=5 // pred_fallthru
        _
    $region6: #{tpu_custom_call.1} parent=1 // loop_footer
      %s18 = sadd.s32 1, %s14
    $region7: #{tpu_custom_call.1} parent=1 // loop_footer_branch
      %13 = sbr.rel target = $region3
    $region8: #{tpu_custom_call.1} parent=1 // loop_exit
      _
    %1170 = vsyncpa [#allocation3], 1
    %s1171 = scalar_lea.sflag [#allocation3], 1
    %1172 = vsyncpa %s1171, 1

// kernel: tpu_custom_call.1
$region0: #{tpu_custom_call.1}
  #allocation0 [shape = 'u32[]', space=smem, size = 0x4, offset = 0x4, fixed_abs, tag = 'smem constant byte address 0x4 - core index']
  #allocation1 [shape = 'u32[144,128]{1,0:T(1,128)}', space=vmem, size = 0x12000, scoped, tag = 'internal scratch']
  %s0 = inlined_call_operand.vmem [shape: bf16[2,256,12], index: 0, kind: input, shape index: {}]
  %s1 = inlined_call_operand.vmem [shape: bf16[2,2,16,12], index: 1, kind: input, shape index: {}]
  %s2 = inlined_call_operand.vmem [shape: bf16[2,2,16,12], index: 2, kind: input, shape index: {}]
  %s3 = inlined_call_operand.vmem [shape: bf16[3,12,128], index: 3, kind: input, shape index: {}]
  %s4 = inlined_call_operand.vmem [shape: f32[1,128], index: 4, kind: input, shape index: {}]
  %s5 = inlined_call_operand.hbm [shape: f32[2,2,128,128], index: 5, kind: output, shape index: {}]
  %s6 = sld [smem:[#allocation0]]
  $region53: #{tpu_custom_call.1} parent=0
    _
  %s8 = ssub.s32 1, %s6
  %s9 = scalar_select 0, %s8, %s6
  $region1: #{tpu_custom_call.1} parent=0
    #allocation2 [shape = 'u8[131072]{0}', space=vmem, size = 0x20000, scoped, tag = 'output window, operand 0']
    #allocation3 [shape = 's32[2]{0}', space=sflag, size = 0x8, scoped, tag = 'scoped memory for tpu_custom_call.1']
    %10 = vsyncpa [#allocation3], 0
    %s11 = scalar_lea.sflag [#allocation3], 1
    %12 = vsyncpa %s11, 0
    loop: start=0, step=1, limit=6
    $region2: #{tpu_custom_call.1} parent=1 // loop_pre_header
      _
    $region3: #{tpu_custom_call.1} parent=1 // loop_header
      %s14 = sphi 0, %s18
      %p15 = scmp.ge.s32.totalorder %s14, 6
      %s21 = sphi 0, %s40
      %s22 = sphi 0, %s36
      %s23 = sphi 0, %s32
      %s24 = sphi 0, %s21
      %s25 = sphi 0, %s22
      %s26 = sphi 0, %s23
      %s27 = sphi 0, %s24
      %s28 = sphi 0, %s25
      %s29 = sphi 0, %s26
      %s45 = sphi 0, %s47
      %s48 = sphi 0, %s45
      %s49 = sphi 0, %s48
      %s65 = sphi 0, %s49
      %s73 = sphi 0, %s75
      %s76 = sphi 0, %s73
      %s77 = sphi 0, %s76
      %s93 = sphi 0, %s77
      %s101 = sphi 0, %s103
      %s104 = sphi 0, %s101
      %s105 = sphi 0, %s104
      %s121 = sphi 0, %s105
      %s127 = sphi 0, %s129
      %s130 = sphi 0, %s127
      %s131 = sphi 0, %s130
      %s147 = sphi 0, %s131
      %s153 = sphi 0, %s155
      %s156 = sphi 0, %s153
      %s157 = sphi 0, %s156
      %s173 = sphi 0, %s157
      %s183 = sphi 0, %s185
      %s186 = sphi 0, %s183
      %s187 = sphi 0, %s186
      %s203 = sphi 0, %s187
    $region4: #{tpu_custom_call.1} parent=1 // loop_header_branch
      %17 = sbr.rel (%p15) target = $region8
    $region5: #{tpu_custom_call.1} parent=1 // loop_body
      %s19 = ssub.s32 %s14, 1
      %s20 = ssub.s32 %s14, 2
      %s30 = sadd.s32 1, %s23
      %p31 = scmp.ge.s32.totalorder %s30, 2
      %s32 = scalar_select %p31, 0, %s30
      %s33 = sadd.s32 1, %s22
      %s34 = scalar_select %p31, %s33, %s22
      %p35 = scmp.ge.s32.totalorder %s34, 2
      %s36 = scalar_select %p35, 0, %s34
      %s37 = sadd.s32 1, %s21
      %s38 = scalar_select %p35, %s37, %s21
      %p39 = scmp.ge.s32.totalorder %s38, 1
      %s40 = scalar_select %p39, 0, %s38
      %s41 = ssub.s32 %s22, %s36
      %s42 = ssub.s32 %s23, %s32
      %s43 = sor.u32 %s41, %s42
      %p44 = scmp.eq.s32.totalorder %s43, 0
      %s46 = sadd.s32 %s45, 1
      %s47 = scalar_select %p44, %s45, %s46
      %p50 = pneg %p44
      %p51 = scmp.eq.s32.totalorder %s14, 3
      %p52 = por %p50, %p51
      %p53 = scmp.ne.s32.totalorder %s45, %s48
      %p54 = scmp.eq.s32.totalorder %s14, 0
      %p55 = por %p53, %p54
      %p56 = scmp.ne.s32.totalorder %s45, %s48
      %p57 = scmp.eq.s32.totalorder %s19, 3
      %p58 = por %p56, %p57
      %p59 = scmp.ne.s32.totalorder %s48, %s49
      %p60 = scmp.eq.s32.totalorder %s19, 0
      %p61 = por %p59, %p60
      %p62 = scmp.ne.s32.totalorder %s48, %s49
      %p63 = scmp.eq.s32.totalorder %s20, 3
      %p64 = por %p62, %p63
      %p66 = scmp.ne.s32.totalorder %s49, %s65
      %p67 = scmp.eq.s32.totalorder %s20, 0
      %p68 = por %p66, %p67
      %s69 = ssub.s32 %s22, %s36
      %s70 = ssub.s32 %s23, %s32
      %s71 = sor.u32 %s69, %s70
      %p72 = scmp.eq.s32.totalorder %s71, 0
      %s74 = sadd.s32 %s73, 1
      %s75 = scalar_select %p72, %s73, %s74
      %p78 = pneg %p72
      %p79 = scmp.eq.s32.totalorder %s14, 3
      %p80 = por %p78, %p79
      %p81 = scmp.ne.s32.totalorder %s73, %s76
      %p82 = scmp.eq.s32.totalorder %s14, 0
      %p83 = por %p81, %p82
      %p84 = scmp.ne.s32.totalorder %s73, %s76
      %p85 = scmp.eq.s32.totalorder %s19, 3
      %p86 = por %p84, %p85
      %p87 = scmp.ne.s32.totalorder %s76, %s77
      %p88 = scmp.eq.s32.totalorder %s19, 0
      %p89 = por %p87, %p88
      %p90 = scmp.ne.s32.totalorder %s76, %s77
      %p91 = scmp.eq.s32.totalorder %s20, 3
      %p92 = por %p90, %p91
      %p94 = scmp.ne.s32.totalorder %s77, %s93
      %p95 = scmp.eq.s32.totalorder %s20, 0
      %p96 = por %p94, %p95
      %s97 = ssub.s32 %s22, %s36
      %s98 = ssub.s32 %s23, %s32
      %s99 = sor.u32 %s97, %s98
      %p100 = scmp.eq.s32.totalorder %s99, 0
      %s102 = sadd.s32 %s101, 1
      %s103 = scalar_select %p100, %s101, %s102
      %p106 = pneg %p100
      %p107 = scmp.eq.s32.totalorder %s14, 3
      %p108 = por %p106, %p107
      %p109 = scmp.ne.s32.totalorder %s101, %s104
      %p110 = scmp.eq.s32.totalorder %s14, 0
      %p111 = por %p109, %p110
      %p112 = scmp.ne.s32.totalorder %s101, %s104
      %p113 = scmp.eq.s32.totalorder %s19, 3
      %p114 = por %p112, %p113
      %p115 = scmp.ne.s32.totalorder %s104, %s105
      %p116 = scmp.eq.s32.totalorder %s19, 0
      %p117 = por %p115, %p116
      %p118 = scmp.ne.s32.totalorder %s104, %s105
      %p119 = scmp.eq.s32.totalorder %s20, 3
      %p120 = por %p118, %p119
      %p122 = scmp.ne.s32.totalorder %s105, %s121
      %p123 = scmp.eq.s32.totalorder %s20, 0
      %p124 = por %p122, %p123
      %s125 = ssub.s32 %s21, %s40
      %p126 = scmp.eq.s32.totalorder %s125, 0
      %s128 = sadd.s32 %s127, 1
      %s129 = scalar_select %p126, %s127, %s128
      %p132 = pneg %p126
      %p133 = scmp.eq.s32.totalorder %s14, 3
      %p134 = por %p132, %p133
      %p135 = scmp.ne.s32.totalorder %s127, %s130
      %p136 = scmp.eq.s32.totalorder %s14, 0
      %p137 = por %p135, %p136
      %p138 = scmp.ne.s32.totalorder %s127, %s130
      %p139 = scmp.eq.s32.totalorder %s19, 3
      %p140 = por %p138, %p139
      %p141 = scmp.ne.s32.totalorder %s130, %s131
      %p142 = scmp.eq.s32.totalorder %s19, 0
      %p143 = por %p141, %p142
      %p144 = scmp.ne.s32.totalorder %s130, %s131
      %p145 = scmp.eq.s32.totalorder %s20, 3
      %p146 = por %p144, %p145
      %p148 = scmp.ne.s32.totalorder %s131, %s147
      %p149 = scmp.eq.s32.totalorder %s20, 0
      %p150 = por %p148, %p149
      %s151 = ssub.s32 %s21, %s40
      %p152 = scmp.eq.s32.totalorder %s151, 0
      %s154 = sadd.s32 %s153, 1
      %s155 = scalar_select %p152, %s153, %s154
      %p158 = pneg %p152
      %p159 = scmp.eq.s32.totalorder %s14, 3
      %p160 = por %p158, %p159
      %p161 = scmp.ne.s32.totalorder %s153, %s156
      %p162 = scmp.eq.s32.totalorder %s14, 0
      %p163 = por %p161, %p162
      %p164 = scmp.ne.s32.totalorder %s153, %s156
      %p165 = scmp.eq.s32.totalorder %s19, 3
      %p166 = por %p164, %p165
      %p167 = scmp.ne.s32.totalorder %s156, %s157
      %p168 = scmp.eq.s32.totalorder %s19, 0
      %p169 = por %p167, %p168
      %p170 = scmp.ne.s32.totalorder %s156, %s157
      %p171 = scmp.eq.s32.totalorder %s20, 3
      %p172 = por %p170, %p171
      %p174 = scmp.ne.s32.totalorder %s157, %s173
      %p175 = scmp.eq.s32.totalorder %s20, 0
      %p176 = por %p174, %p175
      %s177 = ssub.s32 %s22, %s36
      %s178 = ssub.s32 %s23, %s32
      %s179 = sor.u32 %s177, %s178
      %s180 = ssub.s32 %s21, %s40
      %s181 = sor.u32 %s179, %s180
      %p182 = scmp.eq.s32.totalorder %s181, 0
      %s184 = sadd.s32 %s183, 1
      %s185 = scalar_select %p182, %s183, %s184
      %p188 = pneg %p182
      %p189 = scmp.eq.s32.totalorder %s14, 3
      %p190 = por %p188, %p189
      %p191 = scmp.ne.s32.totalorder %s183, %s186
      %p192 = scmp.eq.s32.totalorder %s14, 0
      %p193 = por %p191, %p192
      %p194 = scmp.ne.s32.totalorder %s183, %s186
      %p195 = scmp.eq.s32.totalorder %s19, 3
      %p196 = por %p194, %p195
      %p197 = scmp.ne.s32.totalorder %s186, %s187
      %p198 = scmp.eq.s32.totalorder %s19, 0
      %p199 = por %p197, %p198
      %p200 = scmp.ne.s32.totalorder %s186, %s187
      %p201 = scmp.eq.s32.totalorder %s20, 3
      %p202 = por %p200, %p201
      %p204 = scmp.ne.s32.totalorder %s187, %s203
      %p205 = scmp.eq.s32.totalorder %s20, 0
      %p206 = por %p204, %p205
      %p207 = scmp.le.s32.totalorder 1, %s14
      %p208 = scmp.lt.s32.totalorder %s14, 5
      %p209 = pnand %p207, %p208
      %p210 = pneg %p209
      // Predicated region
      $region9: #{tpu_custom_call.1} parent=5 // pred_check
        _
      $region10: #{tpu_custom_call.1} parent=5 // pred_check_branch
        %212 = sbr.rel (%p209) target = $region12
      $region11: #{tpu_custom_call.1} parent=5 // pred_region
        %s213 = ssub.s32 %s14, 1
        // Predicated region
        $region13: #{tpu_custom_call.1} parent=11 // pred_check
          %p214 = pneg %p143
        $region14: #{tpu_custom_call.1} parent=11 // pred_check_branch
          %216 = sbr.rel (%p214) target = $region16
        $region15: #{tpu_custom_call.1} parent=11 // pred_region
          %p217 = scmp.lt.s32.totalorder %s24, 0
          %s218 = scalar_select %p217, %s24, 0
          %s219 = smul.addr %s218, 4
          %s220 = scalar_lea.vmem %s3, %s219
        $region16: #{tpu_custom_call.1} parent=11 // pred_fallthru
          _
        // Predicated region
        $region17: #{tpu_custom_call.1} parent=11 // pred_check
          %p221 = pneg %p169
        $region18: #{tpu_custom_call.1} parent=11 // pred_check_branch
          %223 = sbr.rel (%p221) target = $region20
        $region19: #{tpu_custom_call.1} parent=11 // pred_region
          %p224 = scmp.lt.s32.totalorder %s24, 0
          %s225 = scalar_select %p224, %s24, 0
          %s226 = scalar_lea.vmem %s4, %s225
        $region20: #{tpu_custom_call.1} parent=11 // pred_fallthru
          _
      $region12: #{tpu_custom_call.1} parent=5 // pred_fallthru
        _
      %p227 = scmp.lt.s32.totalorder %s14, 4
      // Predicated region
      $region21: #{tpu_custom_call.1} parent=5 // pred_check
        %p228 = pneg %p227
      $region22: #{tpu_custom_call.1} parent=5 // pred_check_branch
        %230 = sbr.rel (%p228) target = $region24
      $region23: #{tpu_custom_call.1} parent=5 // pred_region
        // Predicated region
        $region25: #{tpu_custom_call.1} parent=23 // pred_check
          %p231 = pneg %p55
        $region26: #{tpu_custom_call.1} parent=23 // pred_check_branch
          %233 = sbr.rel (%p231) target = $region28
        $region27: #{tpu_custom_call.1} parent=23 // pred_region
          %s234 = smul.u32 16, %s23
          %p235 = scmp.lt.s32.totalorder %s22, 1
          %s236 = scalar_select %p235, %s22, 1
          %p237 = scmp.lt.s32.totalorder %s234, 31
          %s238 = scalar_select %p237, %s234, 31
          %s239 = smul.addr %s236, 32
          %s240 = sadd.s32 %s238, %s239
          %s241 = smul.addr %s240, 4
          %s242 = scalar_lea.vmem %s0, %s241
          %s243 = smul.u32 16, %s23
        $region28: #{tpu_custom_call.1} parent=23 // pred_fallthru
          _
        // Predicated region
        $region29: #{tpu_custom_call.1} parent=23 // pred_check
          %p244 = pneg %p83
        $region30: #{tpu_custom_call.1} parent=23 // pred_check_branch
          %246 = sbr.rel (%p244) target = $region32
        $region31: #{tpu_custom_call.1} parent=23 // pred_region
          %p247 = scmp.lt.s32.totalorder %s22, 1
          %s248 = scalar_select %p247, %s22, 1
          %p249 = scmp.lt.s32.totalorder %s23, 1
          %s250 = scalar_select %p249, %s23, 1
          %s251 = smul.addr %s250, 2
          %s252 = smul.addr %s248, 4
          %s253 = sadd.s32 %s251, %s252
          %s254 = smul.addr %s253, 4
          %s255 = scalar_lea.vmem %s1, %s254
        $region32: #{tpu_custom_call.1} parent=23 // pred_fallthru
          _
        // Predicated region
        $region33: #{tpu_custom_call.1} parent=23 // pred_check
          %p256 = pneg %p111
        $region34: #{tpu_custom_call.1} parent=23 // pred_check_branch
          %258 = sbr.rel (%p256) target = $region36
        $region35: #{tpu_custom_call.1} parent=23 // pred_region
          %p259 = scmp.lt.s32.totalorder %s22, 1
          %s260 = scalar_select %p259, %s22, 1
          %p261 = scmp.lt.s32.totalorder %s23, 1
          %s262 = scalar_select %p261, %s23, 1
          %s263 = smul.addr %s262, 2
          %s264 = smul.addr %s260, 4
          %s265 = sadd.s32 %s263, %s264
          %s266 = smul.addr %s265, 4
          %s267 = scalar_lea.vmem %s2, %s266
        $region36: #{tpu_custom_call.1} parent=23 // pred_fallthru
          _
      $region24: #{tpu_custom_call.1} parent=5 // pred_fallthru
        _
      %p268 = scmp.le.s32.totalorder 1, %s14
      %p269 = scmp.lt.s32.totalorder %s14, 5
      %p270 = pnand %p268, %p269
      %p271 = pneg %p270
      // Predicated region
      $region37: #{tpu_custom_call.1} parent=5 // pred_check
        _
      $region38: #{tpu_custom_call.1} parent=5 // pred_check_branch
        %273 = sbr.rel (%p270) target = $region40
      $region39: #{tpu_custom_call.1} parent=5 // pred_region
        %s274 = ssub.s32 %s14, 1
        %s275 = smul.u32 16, %s26
        %p276 = scmp.lt.s32.totalorder %s25, 1
        %s277 = scalar_select %p276, %s25, 1
        %p278 = scmp.lt.s32.totalorder %s275, 31
        %s279 = scalar_select %p278, %s275, 31
        %s280 = smul.addr %s277, 32
        %s281 = sadd.s32 %s279, %s280
        %s282 = smul.addr %s281, 4
        %s283 = scalar_lea.vmem %s0, %s282
        %p284 = pneg %p61
        %p285 = pneg %p58
        %p286 = scmp.lt.s32.totalorder %s25, 1
        %s287 = scalar_select %p286, %s25, 1
        %p288 = scmp.lt.s32.totalorder %s26, 1
        %s289 = scalar_select %p288, %s26, 1
        %s290 = smul.addr %s289, 2
        %s291 = smul.addr %s287, 4
        %s292 = sadd.s32 %s290, %s291
        %s293 = smul.addr %s292, 4
        %s294 = scalar_lea.vmem %s1, %s293
        %p295 = pneg %p89
        %p296 = pneg %p86
        %p297 = scmp.lt.s32.totalorder %s25, 1
        %s298 = scalar_select %p297, %s25, 1
        %p299 = scmp.lt.s32.totalorder %s26, 1
        %s300 = scalar_select %p299, %s26, 1
        %s301 = smul.addr %s300, 2
        %s302 = smul.addr %s298, 4
        %s303 = sadd.s32 %s301, %s302
        %s304 = smul.addr %s303, 4
        %s305 = scalar_lea.vmem %s2, %s304
        %p306 = pneg %p117
        %p307 = pneg %p114
        %p308 = scmp.lt.s32.totalorder %s24, 0
        %s309 = scalar_select %p308, %s24, 0
        %s310 = smul.addr %s309, 4
        %s311 = scalar_lea.vmem %s3, %s310
        %p312 = pneg %p143
        %p313 = pneg %p140
        %p314 = scmp.lt.s32.totalorder %s24, 0
        %s315 = scalar_select %p314, %s24, 0
        %s316 = scalar_lea.vmem %s4, %s315
        %p317 = pneg %p169
        %p318 = pneg %p166
        %p319 = pneg %p199
        %p320 = pneg %p196
        %s321 = sand.u32 %s186, 1
        %s322 = scalar_lea.sflag [#allocation3], %s321
        %s323 = sand.u32 %s186, 1
        %s324 = smul.addr %s323, 128
        %s325 = scalar_lea.vmem [#allocation2], %s324
        %s326 = smul.u32 16, %s26
        %p327 = scmp.lt.s32.totalorder %s25, 1
        %s328 = scalar_select %p327, %s25, 1
        %p329 = scmp.lt.s32.totalorder %s326, 31
        %s330 = scalar_select %p329, %s326, 31
        %s331 = smul.addr %s328, 32
        %s332 = sadd.s32 %s330, %s331
        %s333 = smul.addr %s332, 4
        %s334 = scalar_lea.vmem %s0, %s333
        %s335 = smul.u32 16, %s26
        %p336 = scmp.lt.s32.totalorder %s25, 1
        %s337 = scalar_select %p336, %s25, 1
        %p338 = scmp.lt.s32.totalorder %s26, 1
        %s339 = scalar_select %p338, %s26, 1
        %s340 = smul.addr %s339, 2
        %s341 = smul.addr %s337, 4
        %s342 = sadd.s32 %s340, %s341
        %s343 = smul.addr %s342, 4
        %s344 = scalar_lea.vmem %s1, %s343
        %p345 = scmp.lt.s32.totalorder %s25, 1
        %s346 = scalar_select %p345, %s25, 1
        %p347 = scmp.lt.s32.totalorder %s26, 1
        %s348 = scalar_select %p347, %s26, 1
        %s349 = smul.addr %s348, 2
        %s350 = smul.addr %s346, 4
        %s351 = sadd.s32 %s349, %s350
        %s352 = smul.addr %s351, 4
        %s353 = scalar_lea.vmem %s2, %s352
        %p354 = scmp.lt.s32.totalorder %s24, 0
        %s355 = scalar_select %p354, %s24, 0
        %s356 = smul.addr %s355, 4
        %s357 = scalar_lea.vmem %s3, %s356
        %p358 = scmp.lt.s32.totalorder %s24, 0
        %s359 = scalar_select %p358, %s24, 0
        %s360 = scalar_lea.vmem %s4, %s359
        %v362 = vld [vmem:[%s334] sm:$0xf]
        %v363 = vld [vmem:[%s334 + $0x4] sm:$0xf]
        %v364 = vld [vmem:[%s334 + $0x8] sm:$0xf]
        %v365 = vld [vmem:[%s334 + $0xc] sm:$0xf]
        %v366 = vld [vmem:[%s334 + $0x10] sm:$0xf]
        %v367 = vld [vmem:[%s334 + $0x14] sm:$0xf]
        %v368 = vld [vmem:[%s334 + $0x18] sm:$0xf]
        %v369 = vld [vmem:[%s334 + $0x1c] sm:$0xf]
        %v370 = vld [vmem:[%s334 + $0x20] sm:$0xf]
        %v371 = vld [vmem:[%s334 + $0x24] sm:$0xf]
        %v372 = vld [vmem:[%s334 + $0x28] sm:$0xf]
        %v373 = vld [vmem:[%s334 + $0x2c] sm:$0xf]
        %v374 = vld [vmem:[%s334 + $0x30] sm:$0xf]
        %v375 = vld [vmem:[%s334 + $0x34] sm:$0xf]
        %v376 = vld [vmem:[%s334 + $0x38] sm:$0xf]
        %v377 = vld [vmem:[%s334 + $0x3c] sm:$0xf]
        %s378 = scalar_lea.vmem %s357, 8
        %v379 = vld [vmem:[%s378] sm:$0xf]
        %v380 = vld [vmem:[%s378 + $0x4] sm:$0x3]
        %v381 = vld [vmem:[%s360] sm:$0x1]
        %v383 = vlaneseq
        %v384 = vshrl.u32 %v383, 7
        %v385 = vsub.s32 0, %v384
        %v386 = vrot.slane %v381, %v385
        %v404 = vunpack.c.l.b16 %v362
        %v405 = vunpack.c.l.b16 %v363
        %v406 = vunpack.c.l.b16 %v364
        %v407 = vunpack.c.l.b16 %v365
        %v408 = vunpack.c.l.b16 %v366
        %v409 = vunpack.c.l.b16 %v367
        %v410 = vunpack.c.l.b16 %v368
        %v411 = vunpack.c.l.b16 %v369
        %v412 = vunpack.c.l.b16 %v370
        %v413 = vunpack.c.l.b16 %v371
        %v414 = vunpack.c.l.b16 %v372
        %v415 = vunpack.c.l.b16 %v373
        %v416 = vunpack.c.l.b16 %v374
        %v417 = vunpack.c.l.b16 %v375
        %v418 = vunpack.c.l.b16 %v376
        %v419 = vunpack.c.l.b16 %v377
        %v420 = vpack.c.b16 %v405, %v404
        %v421 = vpack.c.b16 %v407, %v406
        %v422 = vpack.c.b16 %v409, %v408
        %v423 = vpack.c.b16 %v411, %v410
        %v424 = vpack.c.b16 %v413, %v412
        %v425 = vpack.c.b16 %v415, %v414
        %v426 = vpack.c.b16 %v417, %v416
        %v427 = vpack.c.b16 %v419, %v418
        %v430 = vunpack.c.l.b16 %v379
        %v431 = vunpack.c.l.b16 %v380
        %v432 = vpack.c.b16 %v431, %v430
        %vm433 = vcmask 97280
        %v435 = vsel %vm433, %v420, 0
        %v438 = vsel %vm433, %v421, 0
        %v441 = vsel %vm433, %v422, 0
        %v444 = vsel %vm433, %v423, 0
        %v447 = vsel %vm433, %v424, 0
        %v450 = vsel %vm433, %v425, 0
        %v453 = vsel %vm433, %v426, 0
        %v456 = vsel %vm433, %v427, 0
        %vm458 = vcmask 1045504
        %v460 = vsel %vm458, %v432, 0
        %462 = vmatprep.subr.bf16.mxu0 0
        %463 = vmatpush1.bf16.msra.mxu0 %v460
        %464 = vmatprep.subr.bf16.mxu0 0
        %465 = vmatpush1.bf16.msra.mxu0 0
        %466 = vmatprep.subr.bf16.mxu0 0
        %467 = vmatpush1.bf16.msra.mxu0 0
        %468 = vmatprep.subr.bf16.mxu0 0
        %469 = vmatpush1.bf16.msra.mxu0 0
        %470 = vmatprep.subr.bf16.mxu0 0
        %471 = vmatpush1.bf16.msra.mxu0 0
        %472 = vmatprep.subr.bf16.mxu0 0
        %473 = vmatpush1.bf16.msra.mxu0 0
        %474 = vmatprep.subr.bf16.mxu0 0
        %475 = vmatpush1.bf16.msra.mxu0 0
        %476 = vmatprep.subr.bf16.mxu0 0
        %477 = vmatpush1.bf16.msra.mxu0 0
        %478 = vmatprep.subr.bf16.mxu0 0
        %479 = vmatpush1.bf16.msra.mxu0 0
        %480 = vmatprep.subr.bf16.mxu0 0
        %481 = vmatpush1.bf16.msra.mxu0 0
        %482 = vmatprep.subr.bf16.mxu0 0
        %483 = vmatpush1.bf16.msra.mxu0 0
        %484 = vmatprep.subr.bf16.mxu0 0
        %485 = vmatpush1.bf16.msra.mxu0 0
        %486 = vmatprep.subr.bf16.mxu0 0
        %487 = vmatpush1.bf16.msra.mxu0 0
        %488 = vmatprep.subr.bf16.mxu0 0
        %489 = vmatpush1.bf16.msra.mxu0 0
        %490 = vmatprep.subr.bf16.mxu0 0
        %491 = vmatpush1.bf16.msra.mxu0 0
        %492 = vmatprep.subr.bf16.mxu0 0
        %493 = vmatpush1.bf16.msra.mxu0 0
        %494 = vmatprep.mubr.bf16.mxu0 0
        %495 = vmatmul.mubr.bf16.gmra.mrb[0].mxu0 %v435
        %v496 = vpop.f32.mrb[0].mxu0
        %v497 = vadd.f32 %v386, %v496
        %v498 = vpop.f32.mrb[0].mxu0
        %v499 = vpop.f32.mrb[0].mxu0
        %v500 = vadd.f32 %v386, %v499
        %v501 = vpop.f32.mrb[0].mxu0
        %502 = vmatprep.mubr.bf16.mxu0 0
        %503 = vmatmul.mubr.bf16.gmra.mrb[0].mxu0 %v438
        %v504 = vpop.f32.mrb[0].mxu0
        %v505 = vadd.f32 %v386, %v504
        %v506 = vpop.f32.mrb[0].mxu0
        %v507 = vpop.f32.mrb[0].mxu0
        %v508 = vadd.f32 %v386, %v507
        %v509 = vpop.f32.mrb[0].mxu0
        %510 = vmatprep.mubr.bf16.mxu0 0
        %511 = vmatmul.mubr.bf16.gmra.mrb[0].mxu0 %v441
        %v512 = vpop.f32.mrb[0].mxu0
        %v513 = vadd.f32 %v386, %v512
        %v514 = vpop.f32.mrb[0].mxu0
        %v515 = vpop.f32.mrb[0].mxu0
        %v516 = vadd.f32 %v386, %v515
        %v517 = vpop.f32.mrb[0].mxu0
        %518 = vmatprep.mubr.bf16.mxu0 0
        %519 = vmatmul.mubr.bf16.gmra.mrb[0].mxu0 %v444
        %v520 = vpop.f32.mrb[0].mxu0
        %v521 = vadd.f32 %v386, %v520
        %v522 = vpop.f32.mrb[0].mxu0
        %v523 = vpop.f32.mrb[0].mxu0
        %v524 = vadd.f32 %v386, %v523
        %v525 = vpop.f32.mrb[0].mxu0
        %526 = vmatprep.mubr.bf16.mxu0 0
        %527 = vmatmul.mubr.bf16.gmra.mrb[0].mxu0 %v447
        %v528 = vpop.f32.mrb[0].mxu0
        %v529 = vadd.f32 %v386, %v528
        %v530 = vpop.f32.mrb[0].mxu0
        %v531 = vpop.f32.mrb[0].mxu0
        %v532 = vadd.f32 %v386, %v531
        %v533 = vpop.f32.mrb[0].mxu0
        %534 = vmatprep.mubr.bf16.mxu0 0
        %535 = vmatmul.mubr.bf16.gmra.mrb[0].mxu0 %v450
        %v536 = vpop.f32.mrb[0].mxu0
        %v537 = vadd.f32 %v386, %v536
        %v538 = vpop.f32.mrb[0].mxu0
        %v539 = vpop.f32.mrb[0].mxu0
        %v540 = vadd.f32 %v386, %v539
        %v541 = vpop.f32.mrb[0].mxu0
        %542 = vmatprep.mubr.bf16.mxu0 0
        %543 = vmatmul.mubr.bf16.gmra.mrb[0].mxu0 %v453
        %v544 = vpop.f32.mrb[0].mxu0
        %v545 = vadd.f32 %v386, %v544
        %v546 = vpop.f32.mrb[0].mxu0
        %v547 = vpop.f32.mrb[0].mxu0
        %v548 = vadd.f32 %v386, %v547
        %v549 = vpop.f32.mrb[0].mxu0
        %550 = vmatprep.mubr.bf16.mxu0 0
        %551 = vmatmul.mubr.bf16.gmra.mrb[0].mxu0 %v456
        %v552 = vpop.f32.mrb[0].mxu0
        %v553 = vadd.f32 %v386, %v552
        %v554 = vpop.f32.mrb[0].mxu0
        %v555 = vpop.f32.mrb[0].mxu0
        %v556 = vadd.f32 %v386, %v555
        %v557 = vpop.f32.mrb[0].mxu0
        %558 = vdwg.mxu0
        %559 = vst [vmem:[%s325] sm:$0xff] %v497
        %560 = vst [vmem:[%s325 + $0x8] sm:$0xff] %v500
        %561 = vst [vmem:[%s325 + $0x10] sm:$0xff] %v505
        %562 = vst [vmem:[%s325 + $0x18] sm:$0xff] %v508
        %563 = vst [vmem:[%s325 + $0x20] sm:$0xff] %v513
        %564 = vst [vmem:[%s325 + $0x28] sm:$0xff] %v516
        %565 = vst [vmem:[%s325 + $0x30] sm:$0xff] %v521
        %566 = vst [vmem:[%s325 + $0x38] sm:$0xff] %v524
        %567 = vst [vmem:[%s325 + $0x40] sm:$0xff] %v529
        %568 = vst [vmem:[%s325 + $0x48] sm:$0xff] %v532
        %569 = vst [vmem:[%s325 + $0x50] sm:$0xff] %v537
        %570 = vst [vmem:[%s325 + $0x58] sm:$0xff] %v540
        %571 = vst [vmem:[%s325 + $0x60] sm:$0xff] %v545
        %572 = vst [vmem:[%s325 + $0x68] sm:$0xff] %v548
        %573 = vst [vmem:[%s325 + $0x70] sm:$0xff] %v553
        %574 = vst [vmem:[%s325 + $0x78] sm:$0xff] %v556
        %v575 = vld [vmem:[%s325] sm:$0xff]
        %v576 = vld [vmem:[%s325 + $0x8] sm:$0xff]
        %v577 = vld [vmem:[%s344] sm:$0xf]
        %v578 = vld [vmem:[%s344 + $0x4] sm:$0xf]
        %v579 = vld [vmem:[%s357] sm:$0xf]
        %v580 = vld [vmem:[%s357 + $0x4] sm:$0x3]
        %v583 = vunpack.c.l.b16 %v577
        %v584 = vunpack.c.l.b16 %v578
        %v585 = vpack.c.b16 %v584, %v583
        %v588 = vunpack.c.l.b16 %v579
        %v589 = vunpack.c.l.b16 %v580
        %v590 = vpack.c.b16 %v589, %v588
        %v592 = vsel %vm433, %v585, 0
        %v595 = vsel %vm458, %v590, 0
        %597 = vmatprep.subr.bf16.mxu0 0
        %598 = vmatpush1.bf16.msra.mxu0 %v595
        %599 = vmatprep.subr.bf16.mxu0 0
        %600 = vmatpush1.bf16.msra.mxu0 0
        %601 = vmatprep.subr.bf16.mxu0 0
        %602 = vmatpush1.bf16.msra.mxu0 0
        %603 = vmatprep.subr.bf16.mxu0 0
        %604 = vmatpush1.bf16.msra.mxu0 0
        %605 = vmatprep.subr.bf16.mxu0 0
        %606 = vmatpush1.bf16.msra.mxu0 0
        %607 = vmatprep.subr.bf16.mxu0 0
        %608 = vmatpush1.bf16.msra.mxu0 0
        %609 = vmatprep.subr.bf16.mxu0 0
        %610 = vmatpush1.bf16.msra.mxu0 0
        %611 = vmatprep.subr.bf16.mxu0 0
        %612 = vmatpush1.bf16.msra.mxu0 0
        %613 = vmatprep.subr.bf16.mxu0 0
        %614 = vmatpush1.bf16.msra.mxu0 0
        %615 = vmatprep.subr.bf16.mxu0 0
        %616 = vmatpush1.bf16.msra.mxu0 0
        %617 = vmatprep.subr.bf16.mxu0 0
        %618 = vmatpush1.bf16.msra.mxu0 0
        %619 = vmatprep.subr.bf16.mxu0 0
        %620 = vmatpush1.bf16.msra.mxu0 0
        %621 = vmatprep.subr.bf16.mxu0 0
        %622 = vmatpush1.bf16.msra.mxu0 0
        %623 = vmatprep.subr.bf16.mxu0 0
        %624 = vmatpush1.bf16.msra.mxu0 0
        %625 = vmatprep.subr.bf16.mxu0 0
        %626 = vmatpush1.bf16.msra.mxu0 0
        %627 = vmatprep.subr.bf16.mxu0 0
        %628 = vmatpush1.bf16.msra.mxu0 0
        %629 = vmatprep.mubr.bf16.mxu0 0
        %630 = vmatmul.mubr.bf16.gmra.mrb[0].mxu0 %v592
        %v631 = vpop.f32.mrb[0].mxu0
        %v632 = vadd.f32 0.0, %v631
        %v633 = vpop.f32.mrb[0].mxu0
        %v634 = vpop.f32.mrb[0].mxu0
        %v635 = vadd.f32 0.0, %v634
        %v636 = vpop.f32.mrb[0].mxu0
        %637 = vdwg.mxu0
        %v638 = vadd.f32 %v575, %v632
        %v639 = vadd.f32 %v576, %v635
        %640 = vst [vmem:[%s325] sm:$0xff] %v638
        %641 = vst [vmem:[%s325 + $0x8] sm:$0xff] %v639
        %v642 = vld [vmem:[%s325 + $0x10] sm:$0xff]
        %v643 = vld [vmem:[%s325 + $0x18] sm:$0xff]
        %v644 = vld [vmem:[%s325 + $0x20] sm:$0xff]
        %v645 = vld [vmem:[%s325 + $0x28] sm:$0xff]
        %v646 = vld [vmem:[%s325 + $0x30] sm:$0xff]
        %v647 = vld [vmem:[%s325 + $0x38] sm:$0xff]
        %v648 = vld [vmem:[%s325 + $0x40] sm:$0xff]
        %v649 = vld [vmem:[%s325 + $0x48] sm:$0xff]
        %v650 = vld [vmem:[%s325 + $0x50] sm:$0xff]
        %v651 = vld [vmem:[%s325 + $0x58] sm:$0xff]
        %v652 = vld [vmem:[%s325 + $0x60] sm:$0xff]
        %v653 = vld [vmem:[%s325 + $0x68] sm:$0xff]
        %v654 = vld [vmem:[%s325 + $0x70] sm:$0xff]
        %v655 = vld [vmem:[%s325 + $0x78] sm:$0xff]
        %v656 = vld [vmem:[%s334] sm:$0xf]
        %v657 = vld [vmem:[%s334 + $0x4] sm:$0xf]
        %v658 = vld [vmem:[%s334 + $0x8] sm:$0xf]
        %v659 = vld [vmem:[%s334 + $0xc] sm:$0xf]
        %v660 = vld [vmem:[%s334 + $0x10] sm:$0xf]
        %v661 = vld [vmem:[%s334 + $0x14] sm:$0xf]
        %v662 = vld [vmem:[%s334 + $0x18] sm:$0xf]
        %v663 = vld [vmem:[%s334 + $0x1c] sm:$0xf]
        %v664 = vld [vmem:[%s334 + $0x20] sm:$0xf]
        %v665 = vld [vmem:[%s334 + $0x24] sm:$0xf]
        %v666 = vld [vmem:[%s334 + $0x28] sm:$0xf]
        %v667 = vld [vmem:[%s334 + $0x2c] sm:$0xf]
        %v668 = vld [vmem:[%s334 + $0x30] sm:$0xf]
        %v669 = vld [vmem:[%s334 + $0x34] sm:$0xf]
        %v670 = vld [vmem:[%s357] sm:$0xf]
        %v671 = vld [vmem:[%s357 + $0x4] sm:$0x3]
        %v686 = vunpack.c.l.b16 %v656
        %v687 = vunpack.c.l.b16 %v657
        %v688 = vunpack.c.l.b16 %v658
        %v689 = vunpack.c.l.b16 %v659
        %v690 = vunpack.c.l.b16 %v660
        %v691 = vunpack.c.l.b16 %v661
        %v692 = vunpack.c.l.b16 %v662
        %v693 = vunpack.c.l.b16 %v663
        %v694 = vunpack.c.l.b16 %v664
        %v695 = vunpack.c.l.b16 %v665
        %v696 = vunpack.c.l.b16 %v666
        %v697 = vunpack.c.l.b16 %v667
        %v698 = vunpack.c.l.b16 %v668
        %v699 = vunpack.c.l.b16 %v669
        %v700 = vpack.c.b16 %v687, %v686
        %v701 = vpack.c.b16 %v689, %v688
        %v702 = vpack.c.b16 %v691, %v690
        %v703 = vpack.c.b16 %v693, %v692
        %v704 = vpack.c.b16 %v695, %v694
        %v705 = vpack.c.b16 %v697, %v696
        %v706 = vpack.c.b16 %v699, %v698
        %v709 = vunpack.c.l.b16 %v670
        %v710 = vunpack.c.l.b16 %v671
        %v711 = vpack.c.b16 %v710, %v709
        %v713 = vsel %vm433, %v700, 0
        %v716 = vsel %vm433, %v701, 0
        %v719 = vsel %vm433, %v702, 0
        %v722 = vsel %vm433, %v703, 0
        %v725 = vsel %vm433, %v704, 0
        %v728 = vsel %vm433, %v705, 0
        %v731 = vsel %vm433, %v706, 0
        %v734 = vsel %vm458, %v711, 0
        %736 = vmatprep.subr.bf16.mxu0 0
        %737 = vmatpush1.bf16.msra.mxu0 %v734
        %738 = vmatprep.subr.bf16.mxu0 0
        %739 = vmatpush1.bf16.msra.mxu0 0
        %740 = vmatprep.subr.bf16.mxu0 0
        %741 = vmatpush1.bf16.msra.mxu0 0
        %742 = vmatprep.subr.bf16.mxu0 0
        %743 = vmatpush1.bf16.msra.mxu0 0
        %744 = vmatprep.subr.bf16.mxu0 0
        %745 = vmatpush1.bf16.msra.mxu0 0
        %746 = vmatprep.subr.bf16.mxu0 0
        %747 = vmatpush1.bf16.msra.mxu0 0
        %748 = vmatprep.subr.bf16.mxu0 0
        %749 = vmatpush1.bf16.msra.mxu0 0
        %750 = vmatprep.subr.bf16.mxu0 0
        %751 = vmatpush1.bf16.msra.mxu0 0
        %752 = vmatprep.subr.bf16.mxu0 0
        %753 = vmatpush1.bf16.msra.mxu0 0
        %754 = vmatprep.subr.bf16.mxu0 0
        %755 = vmatpush1.bf16.msra.mxu0 0
        %756 = vmatprep.subr.bf16.mxu0 0
        %757 = vmatpush1.bf16.msra.mxu0 0
        %758 = vmatprep.subr.bf16.mxu0 0
        %759 = vmatpush1.bf16.msra.mxu0 0
        %760 = vmatprep.subr.bf16.mxu0 0
        %761 = vmatpush1.bf16.msra.mxu0 0
        %762 = vmatprep.subr.bf16.mxu0 0
        %763 = vmatpush1.bf16.msra.mxu0 0
        %764 = vmatprep.subr.bf16.mxu0 0
        %765 = vmatpush1.bf16.msra.mxu0 0
        %766 = vmatprep.subr.bf16.mxu0 0
        %767 = vmatpush1.bf16.msra.mxu0 0
        %768 = vmatprep.mubr.bf16.mxu0 0
        %769 = vmatmul.mubr.bf16.gmra.mrb[0].mxu0 %v713
        %v770 = vpop.f32.mrb[0].mxu0
        %v771 = vadd.f32 0.0, %v770
        %v772 = vpop.f32.mrb[0].mxu0
        %v773 = vpop.f32.mrb[0].mxu0
        %v774 = vadd.f32 0.0, %v773
        %v775 = vpop.f32.mrb[0].mxu0
        %776 = vmatprep.mubr.bf16.mxu0 0
        %777 = vmatmul.mubr.bf16.gmra.mrb[0].mxu0 %v716
        %v778 = vpop.f32.mrb[0].mxu0
        %v779 = vadd.f32 0.0, %v778
        %v780 = vpop.f32.mrb[0].mxu0
        %v781 = vpop.f32.mrb[0].mxu0
        %v782 = vadd.f32 0.0, %v781
        %v783 = vpop.f32.mrb[0].mxu0
        %784 = vmatprep.mubr.bf16.mxu0 0
        %785 = vmatmul.mubr.bf16.gmra.mrb[0].mxu0 %v719
        %v786 = vpop.f32.mrb[0].mxu0
        %v787 = vadd.f32 0.0, %v786
        %v788 = vpop.f32.mrb[0].mxu0
        %v789 = vpop.f32.mrb[0].mxu0
        %v790 = vadd.f32 0.0, %v789
        %v791 = vpop.f32.mrb[0].mxu0
        %792 = vmatprep.mubr.bf16.mxu0 0
        %793 = vmatmul.mubr.bf16.gmra.mrb[0].mxu0 %v722
        %v794 = vpop.f32.mrb[0].mxu0
        %v795 = vadd.f32 0.0, %v794
        %v796 = vpop.f32.mrb[0].mxu0
        %v797 = vpop.f32.mrb[0].mxu0
        %v798 = vadd.f32 0.0, %v797
        %v799 = vpop.f32.mrb[0].mxu0
        %800 = vmatprep.mubr.bf16.mxu0 0
        %801 = vmatmul.mubr.bf16.gmra.mrb[0].mxu0 %v725
        %v802 = vpop.f32.mrb[0].mxu0
        %v803 = vadd.f32 0.0, %v802
        %v804 = vpop.f32.mrb[0].mxu0
        %v805 = vpop.f32.mrb[0].mxu0
        %v806 = vadd.f32 0.0, %v805
        %v807 = vpop.f32.mrb[0].mxu0
        %808 = vmatprep.mubr.bf16.mxu0 0
        %809 = vmatmul.mubr.bf16.gmra.mrb[0].mxu0 %v728
        %v810 = vpop.f32.mrb[0].mxu0
        %v811 = vadd.f32 0.0, %v810
        %v812 = vpop.f32.mrb[0].mxu0
        %v813 = vpop.f32.mrb[0].mxu0
        %v814 = vadd.f32 0.0, %v813
        %v815 = vpop.f32.mrb[0].mxu0
        %816 = vmatprep.mubr.bf16.mxu0 0
        %817 = vmatmul.mubr.bf16.gmra.mrb[0].mxu0 %v731
        %v818 = vpop.f32.mrb[0].mxu0
        %v819 = vadd.f32 0.0, %v818
        %v820 = vpop.f32.mrb[0].mxu0
        %v821 = vpop.f32.mrb[0].mxu0
        %v822 = vadd.f32 0.0, %v821
        %v823 = vpop.f32.mrb[0].mxu0
        %824 = vdwg.mxu0
        %v825 = vadd.f32 %v642, %v771
        %v826 = vadd.f32 %v643, %v774
        %v827 = vadd.f32 %v644, %v779
        %v828 = vadd.f32 %v645, %v782
        %v829 = vadd.f32 %v646, %v787
        %v830 = vadd.f32 %v647, %v790
        %v831 = vadd.f32 %v648, %v795
        %v832 = vadd.f32 %v649, %v798
        %v833 = vadd.f32 %v650, %v803
        %v834 = vadd.f32 %v651, %v806
        %v835 = vadd.f32 %v652, %v811
        %v836 = vadd.f32 %v653, %v814
        %v837 = vadd.f32 %v654, %v819
        %v838 = vadd.f32 %v655, %v822
        %839 = vst [vmem:[%s325 + $0x10] sm:$0xff] %v825
        %840 = vst [vmem:[%s325 + $0x18] sm:$0xff] %v826
        %841 = vst [vmem:[%s325 + $0x20] sm:$0xff] %v827
        %842 = vst [vmem:[%s325 + $0x28] sm:$0xff] %v828
        %843 = vst [vmem:[%s325 + $0x30] sm:$0xff] %v829
        %844 = vst [vmem:[%s325 + $0x38] sm:$0xff] %v830
        %845 = vst [vmem:[%s325 + $0x40] sm:$0xff] %v831
        %846 = vst [vmem:[%s325 + $0x48] sm:$0xff] %v832
        %847 = vst [vmem:[%s325 + $0x50] sm:$0xff] %v833
        %848 = vst [vmem:[%s325 + $0x58] sm:$0xff] %v834
        %849 = vst [vmem:[%s325 + $0x60] sm:$0xff] %v835
        %850 = vst [vmem:[%s325 + $0x68] sm:$0xff] %v836
        %851 = vst [vmem:[%s325 + $0x70] sm:$0xff] %v837
        %852 = vst [vmem:[%s325 + $0x78] sm:$0xff] %v838
        %v853 = vld [vmem:[%s325] sm:$0xff]
        %v854 = vld [vmem:[%s325 + $0x8] sm:$0xff]
        %v855 = vld [vmem:[%s325 + $0x10] sm:$0xff]
        %v856 = vld [vmem:[%s325 + $0x18] sm:$0xff]
        %v857 = vld [vmem:[%s325 + $0x20] sm:$0xff]
        %v858 = vld [vmem:[%s325 + $0x28] sm:$0xff]
        %v859 = vld [vmem:[%s325 + $0x30] sm:$0xff]
        %v860 = vld [vmem:[%s325 + $0x38] sm:$0xff]
        %v861 = vld [vmem:[%s325 + $0x40] sm:$0xff]
        %v862 = vld [vmem:[%s325 + $0x48] sm:$0xff]
        %v863 = vld [vmem:[%s325 + $0x50] sm:$0xff]
        %v864 = vld [vmem:[%s325 + $0x58] sm:$0xff]
        %v865 = vld [vmem:[%s325 + $0x60] sm:$0xff]
        %v866 = vld [vmem:[%s325 + $0x68] sm:$0xff]
        %v867 = vld [vmem:[%s334 + $0x8] sm:$0xf]
        %v868 = vld [vmem:[%s334 + $0xc] sm:$0xf]
        %v869 = vld [vmem:[%s334 + $0x10] sm:$0xf]
        %v870 = vld [vmem:[%s334 + $0x14] sm:$0xf]
        %v871 = vld [vmem:[%s334 + $0x18] sm:$0xf]
        %v872 = vld [vmem:[%s334 + $0x1c] sm:$0xf]
        %v873 = vld [vmem:[%s334 + $0x20] sm:$0xf]
        %v874 = vld [vmem:[%s334 + $0x24] sm:$0xf]
        %v875 = vld [vmem:[%s334 + $0x28] sm:$0xf]
        %v876 = vld [vmem:[%s334 + $0x2c] sm:$0xf]
        %v877 = vld [vmem:[%s334 + $0x30] sm:$0xf]
        %v878 = vld [vmem:[%s334 + $0x34] sm:$0xf]
        %v879 = vld [vmem:[%s334 + $0x38] sm:$0xf]
        %v880 = vld [vmem:[%s334 + $0x3c] sm:$0xf]
        %s881 = scalar_lea.vmem %s357, 16
        %v882 = vld [vmem:[%s881] sm:$0xf]
        %v883 = vld [vmem:[%s881 + $0x4] sm:$0x3]
        %v898 = vunpack.c.l.b16 %v867
        %v899 = vunpack.c.l.b16 %v868
        %v900 = vunpack.c.l.b16 %v869
        %v901 = vunpack.c.l.b16 %v870
        %v902 = vunpack.c.l.b16 %v871
        %v903 = vunpack.c.l.b16 %v872
        %v904 = vunpack.c.l.b16 %v873
        %v905 = vunpack.c.l.b16 %v874
        %v906 = vunpack.c.l.b16 %v875
        %v907 = vunpack.c.l.b16 %v876
        %v908 = vunpack.c.l.b16 %v877
        %v909 = vunpack.c.l.b16 %v878
        %v910 = vunpack.c.l.b16 %v879
        %v911 = vunpack.c.l.b16 %v880
        %v912 = vpack.c.b16 %v899, %v898
        %v913 = vpack.c.b16 %v901, %v900
        %v914 = vpack.c.b16 %v903, %v902
        %v915 = vpack.c.b16 %v905, %v904
        %v916 = vpack.c.b16 %v907, %v906
        %v917 = vpack.c.b16 %v909, %v908
        %v918 = vpack.c.b16 %v911, %v910
        %v921 = vunpack.c.l.b16 %v882
        %v922 = vunpack.c.l.b16 %v883
        %v923 = vpack.c.b16 %v922, %v921
        %v925 = vsel %vm433, %v912, 0
        %v928 = vsel %vm433, %v913, 0
        %v931 = vsel %vm433, %v914, 0
        %v934 = vsel %vm433, %v915, 0
        %v937 = vsel %vm433, %v916, 0
        %v940 = vsel %vm433, %v917, 0
        %v943 = vsel %vm433, %v918, 0
        %v946 = vsel %vm458, %v923, 0
        %948 = vmatprep.subr.bf16.mxu0 0
        %949 = vmatpush1.bf16.msra.mxu0 %v946
        %950 = vmatprep.subr.bf16.mxu0 0
        %951 = vmatpush1.bf16.msra.mxu0 0
        %952 = vmatprep.subr.bf16.mxu0 0
        %953 = vmatpush1.bf16.msra.mxu0 0
        %954 = vmatprep.subr.bf16.mxu0 0
        %955 = vmatpush1.bf16.msra.mxu0 0
        %956 = vmatprep.subr.bf16.mxu0 0
        %957 = vmatpush1.bf16.msra.mxu0 0
        %958 = vmatprep.subr.bf16.mxu0 0
        %959 = vmatpush1.bf16.msra.mxu0 0
        %960 = vmatprep.subr.bf16.mxu0 0
        %961 = vmatpush1.bf16.msra.mxu0 0
        %962 = vmatprep.subr.bf16.mxu0 0
        %963 = vmatpush1.bf16.msra.mxu0 0
        %964 = vmatprep.subr.bf16.mxu0 0
        %965 = vmatpush1.bf16.msra.mxu0 0
        %966 = vmatprep.subr.bf16.mxu0 0
        %967 = vmatpush1.bf16.msra.mxu0 0
        %968 = vmatprep.subr.bf16.mxu0 0
        %969 = vmatpush1.bf16.msra.mxu0 0
        %970 = vmatprep.subr.bf16.mxu0 0
        %971 = vmatpush1.bf16.msra.mxu0 0
        %972 = vmatprep.subr.bf16.mxu0 0
        %973 = vmatpush1.bf16.msra.mxu0 0
        %974 = vmatprep.subr.bf16.mxu0 0
        %975 = vmatpush1.bf16.msra.mxu0 0
        %976 = vmatprep.subr.bf16.mxu0 0
        %977 = vmatpush1.bf16.msra.mxu0 0
        %978 = vmatprep.subr.bf16.mxu0 0
        %979 = vmatpush1.bf16.msra.mxu0 0
        %980 = vmatprep.mubr.bf16.mxu0 0
        %981 = vmatmul.mubr.bf16.gmra.mrb[0].mxu0 %v925
        %v982 = vpop.f32.mrb[0].mxu0
        %v983 = vadd.f32 0.0, %v982
        %v984 = vpop.f32.mrb[0].mxu0
        %v985 = vpop.f32.mrb[0].mxu0
        %v986 = vadd.f32 0.0, %v985
        %v987 = vpop.f32.mrb[0].mxu0
        %988 = vmatprep.mubr.bf16.mxu0 0
        %989 = vmatmul.mubr.bf16.gmra.mrb[0].mxu0 %v928
        %v990 = vpop.f32.mrb[0].mxu0
        %v991 = vadd.f32 0.0, %v990
        %v992 = vpop.f32.mrb[0].mxu0
        %v993 = vpop.f32.mrb[0].mxu0
        %v994 = vadd.f32 0.0, %v993
        %v995 = vpop.f32.mrb[0].mxu0
        %996 = vmatprep.mubr.bf16.mxu0 0
        %997 = vmatmul.mubr.bf16.gmra.mrb[0].mxu0 %v931
        %v998 = vpop.f32.mrb[0].mxu0
        %v999 = vadd.f32 0.0, %v998
        %v1000 = vpop.f32.mrb[0].mxu0
        %v1001 = vpop.f32.mrb[0].mxu0
        %v1002 = vadd.f32 0.0, %v1001
        %v1003 = vpop.f32.mrb[0].mxu0
        %1004 = vmatprep.mubr.bf16.mxu0 0
        %1005 = vmatmul.mubr.bf16.gmra.mrb[0].mxu0 %v934
        %v1006 = vpop.f32.mrb[0].mxu0
        %v1007 = vadd.f32 0.0, %v1006
        %v1008 = vpop.f32.mrb[0].mxu0
        %v1009 = vpop.f32.mrb[0].mxu0
        %v1010 = vadd.f32 0.0, %v1009
        %v1011 = vpop.f32.mrb[0].mxu0
        %1012 = vmatprep.mubr.bf16.mxu0 0
        %1013 = vmatmul.mubr.bf16.gmra.mrb[0].mxu0 %v937
        %v1014 = vpop.f32.mrb[0].mxu0
        %v1015 = vadd.f32 0.0, %v1014
        %v1016 = vpop.f32.mrb[0].mxu0
        %v1017 = vpop.f32.mrb[0].mxu0
        %v1018 = vadd.f32 0.0, %v1017
        %v1019 = vpop.f32.mrb[0].mxu0
        %1020 = vmatprep.mubr.bf16.mxu0 0
        %1021 = vmatmul.mubr.bf16.gmra.mrb[0].mxu0 %v940
        %v1022 = vpop.f32.mrb[0].mxu0
        %v1023 = vadd.f32 0.0, %v1022
        %v1024 = vpop.f32.mrb[0].mxu0
        %v1025 = vpop.f32.mrb[0].mxu0
        %v1026 = vadd.f32 0.0, %v1025
        %v1027 = vpop.f32.mrb[0].mxu0
        %1028 = vmatprep.mubr.bf16.mxu0 0
        %1029 = vmatmul.mubr.bf16.gmra.mrb[0].mxu0 %v943
        %v1030 = vpop.f32.mrb[0].mxu0
        %v1031 = vadd.f32 0.0, %v1030
        %v1032 = vpop.f32.mrb[0].mxu0
        %v1033 = vpop.f32.mrb[0].mxu0
        %v1034 = vadd.f32 0.0, %v1033
        %v1035 = vpop.f32.mrb[0].mxu0
        %1036 = vdwg.mxu0
        %v1037 = vadd.f32 %v853, %v983
        %v1038 = vadd.f32 %v854, %v986
        %v1039 = vadd.f32 %v855, %v991
        %v1040 = vadd.f32 %v856, %v994
        %v1041 = vadd.f32 %v857, %v999
        %v1042 = vadd.f32 %v858, %v1002
        %v1043 = vadd.f32 %v859, %v1007
        %v1044 = vadd.f32 %v860, %v1010
        %v1045 = vadd.f32 %v861, %v1015
        %v1046 = vadd.f32 %v862, %v1018
        %v1047 = vadd.f32 %v863, %v1023
        %v1048 = vadd.f32 %v864, %v1026
        %v1049 = vadd.f32 %v865, %v1031
        %v1050 = vadd.f32 %v866, %v1034
        %1051 = vst [vmem:[%s325] sm:$0xff] %v1037
        %1052 = vst [vmem:[%s325 + $0x8] sm:$0xff] %v1038
        %1053 = vst [vmem:[%s325 + $0x10] sm:$0xff] %v1039
        %1054 = vst [vmem:[%s325 + $0x18] sm:$0xff] %v1040
        %1055 = vst [vmem:[%s325 + $0x20] sm:$0xff] %v1041
        %1056 = vst [vmem:[%s325 + $0x28] sm:$0xff] %v1042
        %1057 = vst [vmem:[%s325 + $0x30] sm:$0xff] %v1043
        %1058 = vst [vmem:[%s325 + $0x38] sm:$0xff] %v1044
        %1059 = vst [vmem:[%s325 + $0x40] sm:$0xff] %v1045
        %1060 = vst [vmem:[%s325 + $0x48] sm:$0xff] %v1046
        %1061 = vst [vmem:[%s325 + $0x50] sm:$0xff] %v1047
        %1062 = vst [vmem:[%s325 + $0x58] sm:$0xff] %v1048
        %1063 = vst [vmem:[%s325 + $0x60] sm:$0xff] %v1049
        %1064 = vst [vmem:[%s325 + $0x68] sm:$0xff] %v1050
        %v1065 = vld [vmem:[%s325 + $0x70] sm:$0xff]
        %v1066 = vld [vmem:[%s325 + $0x78] sm:$0xff]
        %v1067 = vld [vmem:[%s353] sm:$0xf]
        %v1068 = vld [vmem:[%s353 + $0x4] sm:$0xf]
        %v1069 = vld [vmem:[%s881] sm:$0xf]
        %v1070 = vld [vmem:[%s881 + $0x4] sm:$0x3]
        %v1073 = vunpack.c.l.b16 %v1067
        %v1074 = vunpack.c.l.b16 %v1068
        %v1075 = vpack.c.b16 %v1074, %v1073
        %v1078 = vunpack.c.l.b16 %v1069
        %v1079 = vunpack.c.l.b16 %v1070
        %v1080 = vpack.c.b16 %v1079, %v1078
        %v1082 = vsel %vm433, %v1075, 0
        %v1085 = vsel %vm458, %v1080, 0
        %1087 = vmatprep.subr.bf16.mxu0 0
        %1088 = vmatpush1.bf16.msra.mxu0 %v1085
        %1089 = vmatprep.subr.bf16.mxu0 0
        %1090 = vmatpush1.bf16.msra.mxu0 0
        %1091 = vmatprep.subr.bf16.mxu0 0
        %1092 = vmatpush1.bf16.msra.mxu0 0
        %1093 = vmatprep.subr.bf16.mxu0 0
        %1094 = vmatpush1.bf16.msra.mxu0 0
        %1095 = vmatprep.subr.bf16.mxu0 0
        %1096 = vmatpush1.bf16.msra.mxu0 0
        %1097 = vmatprep.subr.bf16.mxu0 0
        %1098 = vmatpush1.bf16.msra.mxu0 0
        %1099 = vmatprep.subr.bf16.mxu0 0
        %1100 = vmatpush1.bf16.msra.mxu0 0
        %1101 = vmatprep.subr.bf16.mxu0 0
        %1102 = vmatpush1.bf16.msra.mxu0 0
        %1103 = vmatprep.subr.bf16.mxu0 0
        %1104 = vmatpush1.bf16.msra.mxu0 0
        %1105 = vmatprep.subr.bf16.mxu0 0
        %1106 = vmatpush1.bf16.msra.mxu0 0
        %1107 = vmatprep.subr.bf16.mxu0 0
        %1108 = vmatpush1.bf16.msra.mxu0 0
        %1109 = vmatprep.subr.bf16.mxu0 0
        %1110 = vmatpush1.bf16.msra.mxu0 0
        %1111 = vmatprep.subr.bf16.mxu0 0
        %1112 = vmatpush1.bf16.msra.mxu0 0
        %1113 = vmatprep.subr.bf16.mxu0 0
        %1114 = vmatpush1.bf16.msra.mxu0 0
        %1115 = vmatprep.subr.bf16.mxu0 0
        %1116 = vmatpush1.bf16.msra.mxu0 0
        %1117 = vmatprep.subr.bf16.mxu0 0
        %1118 = vmatpush1.bf16.msra.mxu0 0
        %1119 = vmatprep.mubr.bf16.mxu0 0
        %1120 = vmatmul.mubr.bf16.gmra.mrb[0].mxu0 %v1082
        %v1121 = vpop.f32.mrb[0].mxu0
        %v1122 = vadd.f32 0.0, %v1121
        %v1123 = vpop.f32.mrb[0].mxu0
        %v1124 = vpop.f32.mrb[0].mxu0
        %v1125 = vadd.f32 0.0, %v1124
        %v1126 = vpop.f32.mrb[0].mxu0
        %1127 = vdwg.mxu0
        %v1128 = vadd.f32 %v1065, %v1122
        %v1129 = vadd.f32 %v1066, %v1125
        %1130 = vst [vmem:[%s325 + $0x70] sm:$0xff] %v1128
        %1131 = vst [vmem:[%s325 + $0x78] sm:$0xff] %v1129
        %s1132 = sand.u32 %s186, 1
        %s1133 = scalar_lea.sflag [#allocation3], %s1132
        %s1134 = sand.u32 %s186, 1
        %s1135 = smul.addr %s1134, 128
        %s1136 = scalar_lea.vmem [#allocation2], %s1135
        // Predicated region
        $region41: #{tpu_custom_call.1} parent=39 // pred_check
          %p1137 = pneg %p196
        $region42: #{tpu_custom_call.1} parent=39 // pred_check_branch
          %1139 = sbr.rel (%p1137) target = $region44
        $region43: #{tpu_custom_call.1} parent=39 // pred_region
          %s1141 = ssub.s32 2048, 2048
          %1142 = vsyncadd %s1133, %s1141
          %s1143 = smul.addr %s26, 16
          %s1144 = sadd.s32 %s24, %s1143
          %s1145 = smul.addr %s25, 32
          %s1146 = sadd.s32 %s1144, %s1145
          %s1147 = smul.addr %s1146, 128
          %s1148 = scalar_lea.hbm %s5, %s1147
          %s1149 = sshll.u32 %s1136, 4
          %s1150 = int_to_ptr.vmem [resolvable:$true] %s1149
          %1155 = dma.vmem_to_hbm [thread:$0]  %s1150, 2048, %s1148, %s1133, 128, 128, 8
        $region44: #{tpu_custom_call.1} parent=39 // pred_fallthru
          _
      $region40: #{tpu_custom_call.1} parent=5 // pred_fallthru
        _
      %p1156 = scmp.le.s32.totalorder 2, %s14
      // Predicated region
      $region45: #{tpu_custom_call.1} parent=5 // pred_check
        %p1157 = pneg %p1156
      $region46: #{tpu_custom_call.1} parent=5 // pred_check_branch
        %1159 = sbr.rel (%p1157) target = $region48
      $region47: #{tpu_custom_call.1} parent=5 // pred_region
        %s1160 = ssub.s32 %s14, 2
        // Predicated region
        $region49: #{tpu_custom_call.1} parent=47 // pred_check
          %p1161 = pneg %p202
        $region50: #{tpu_custom_call.1} parent=47 // pred_check_branch
          %1163 = sbr.rel (%p1161) target = $region52
        $region51: #{tpu_custom_call.1} parent=47 // pred_region
          %s1164 = sand.u32 %s187, 1
          %s1165 = scalar_lea.sflag [#allocation3], %s1164
          %s1166 = sand.u32 %s187, 1
          %s1167 = smul.addr %s1166, 128
          %s1168 = scalar_lea.vmem [#allocation2], %s1167
          %1169 = dma.done %s1165, 2048
        $region52: #{tpu_custom_call.1} parent=47 // pred_fallthru
          _
      $region48: #{tpu_custom_call.1} parent=5 // pred_fallthru
        _
    $region6: #{tpu_custom_call.1} parent=1 // loop_footer
      %s18 = sadd.s32 1, %s14
    $region7: #{tpu_custom_call.1} parent=1 // loop_footer_branch
      %13 = sbr.rel target = $region3
    $region8: #{tpu_custom_call.1} parent=1 // loop_exit
      _
    %1170 = vsyncpa [#allocation3], 1
    %s1171 = scalar_lea.sflag [#allocation3], 1
    %1172 = vsyncpa %s1171, 1

</llo_original>
